<compile_context>
chip_gen: v5e
topology: v5e:2x2
jax: 0.10.0
libtpu: 0.0.40
codegen_flags: <defaults>
</compile_context>

<pallas_src>
import functools

import jax
import jax.numpy as jnp
import numpy as np
from jax.experimental import pallas as pl
from jax.experimental.pallas import tpu as pltpu


# ----------------------------- fused Pallas kernel ------------------------- #

def _discriminator_kernel(*refs, layer_kinds, eps, slope):
    """refs = [x2d, per-layer (A, M, bias) or (A, M, Q, gamma, beta) ..., out_ref]."""
    out_ref = refs[-1]
    x = refs[0][...]                                   # (N*IH, IW*Cin)
    idx = 1
    for kind, act in layer_kinds:
        a_ref, m_ref = refs[idx], refs[idx + 1]
        idx += 2

        # conv as sum over kernel rows of (row-select) @ x @ (folded weights)
        acc = None
        for ki in range(a_ref.shape[0]):               # static unroll (k = 4)
            rows = jnp.dot(a_ref[ki], x, preferred_element_type=jnp.float32)
            term = jnp.dot(rows, m_ref[ki], preferred_element_type=jnp.float32)
            acc = term if acc is None else acc + term

        if kind == "bias":
            y = acc + refs[idx][...]
            idx += 1
        else:
            # Batch-stat BN: conv bias folded away (exactly cancelled by mean subtraction).
            q_ref, g_ref, b_ref = refs[idx], refs[idx + 1], refs[idx + 2]
            idx += 3
            q = q_ref[...]                              # (L, L) per-channel averaging
            mean_b = jnp.dot(jnp.sum(acc, axis=0, keepdims=True), q,
                             preferred_element_type=jnp.float32)
            cen = acc - mean_b
            var_b = jnp.dot(jnp.sum(cen * cen, axis=0, keepdims=True), q,
                            preferred_element_type=jnp.float32)
            scale = jax.lax.rsqrt(var_b + eps) * g_ref[...]   # gamma folded into the scale
            y = cen * scale + b_ref[...]

        if act == "leaky":
            x = jnp.where(y >= 0, y, slope * y)
        elif act == "sigmoid":
            x = 1.0 / (1.0 + jnp.exp(-y))               # exp lands on the EUP slot
        else:
            x = y
    out_ref[...] = x


def _full_spec(shape):
    nd = len(shape)
    return pl.BlockSpec(shape, lambda i, _nd=nd: (0,) * _nd)


# ------------------------- host-side parameter folding --------------------- #

def precompute_constants(params, args, batch, height, width):
    """One-time host (numpy) preprocessing of conv/BN params into the selection and
    folded-weight matrices consumed by the fused kernel (independent of the input)."""
    consts = {}
    N, IH, IW = batch, height, width
    in_ch = args.img_channel_num
    n_layers = len(args.layer_D)
    for i, (out_ch, k, s, p) in enumerate(args.layer_D):
        w = np.asarray(jax.device_get(params[f"conv{i}_w"]), np.float32)   # (Cout,Cin,k,k)
        b = np.asarray(jax.device_get(params[f"conv{i}_b"]), np.float32)
        OH = (IH + 2 * p - k) // s + 1
        OW = (IW + 2 * p - k) // s + 1

        # A[ki, n*OH+oh, n*IH+ih] = 1  iff  ih == s*oh + ki - p   (pad rows -> all-zero row)
        A = np.zeros((k, N * OH, N * IH), np.float32)
        for ki in range(k):
            for n in range(N):
                for oh in range(OH):
                    ih = s * oh + ki - p
                    if 0 <= ih < IH:
                        A[ki, n * OH + oh, n * IH + ih] = 1.0

        # M[ki, iw*Cin+c, ow*Cout+co] = W[co, c, ki, kj]  with  kj = iw - s*ow + p
        M = np.zeros((k, IW * in_ch, OW * out_ch), np.float32)
        for ki in range(k):
            for ow in range(OW):
                for kj in range(k):
                    iw = s * ow + kj - p
                    if 0 <= iw < IW:
                        M[ki, iw * in_ch:(iw + 1) * in_ch,
                          ow * out_ch:(ow + 1) * out_ch] = w[:, :, ki, kj].T

        consts[f"A{i}"] = jnp.asarray(A)
        consts[f"M{i}"] = jnp.asarray(M)

        is_last = i == n_layers - 1
        use_bn = (i > 0) and (not is_last) and args.use_batchnorm
        L = OW * out_ch
        if use_bn:
            gamma = np.asarray(jax.device_get(params[f"bn{i}_gamma"]), np.float32)
            beta = np.asarray(jax.device_get(params[f"bn{i}_beta"]), np.float32)
            lane_ch = np.arange(L) % out_ch             # channel id of each (ow, co) lane
            Q = (lane_ch[:, None] == lane_ch[None, :]).astype(np.float32)
            consts[f"Q{i}"] = jnp.asarray(Q / float(N * OH * OW))
            consts[f"gamma{i}"] = jnp.asarray(np.tile(gamma, OW).reshape(1, L))
            consts[f"beta{i}"] = jnp.asarray(np.tile(beta, OW).reshape(1, L))
        else:
            consts[f"bias{i}"] = jnp.asarray(np.tile(b, OW).reshape(1, L))

        IH, IW, in_ch = OH, OW, out_ch
    consts["_final_hw_c"] = (IH, IW, in_ch)
    return consts


# --------------------------------- wrapper ---------------------------------- #

class Args:
    img_channel_num = 3
    layer_D = [(16, 4, 2, 1), (32, 4, 2, 1), (1, 4, 1, 0)]
    use_batchnorm = True
    use_relu = True


def init_params(key, args):
    params = {}
    in_ch = args.img_channel_num
    n = len(args.layer_D)
    for i, (out_ch, k, _s, _p) in enumerate(args.layer_D):
        key, wk, bk = jax.random.split(key, 3)
        params[f"conv{i}_w"] = 0.02 * jax.random.normal(wk, (out_ch, in_ch, k, k), jnp.float32)
        params[f"conv{i}_b"] = 0.01 * jax.random.normal(bk, (out_ch,), jnp.float32)
        in_ch = out_ch
        if 0 < i < n - 1 and args.use_batchnorm:
            key, gk, bk2 = jax.random.split(key, 3)
            params[f"bn{i}_gamma"] = 1.0 + 0.1 * jax.random.normal(gk, (out_ch,), jnp.float32)
            params[f"bn{i}_beta"] = 0.1 * jax.random.normal(bk2, (out_ch,), jnp.float32)
    return params


def discriminator_forward(x, consts, args):
    """x: (N, C, H, W) float32 NCHW -> (N, 1, 1, 1); one fused pallas_call."""
    N, C, H, W = x.shape
    # Layout change only at the module boundary: rows = (n, h), lanes = (w, c).
    x2d = jnp.transpose(x, (0, 2, 3, 1)).reshape(N * H, W * C)

    n_layers = len(args.layer_D)
    inputs = [x2d]
    layer_kinds = []
    for i in range(n_layers):
        is_last = i == n_layers - 1
        use_bn = (i > 0) and (not is_last) and args.use_batchnorm
        inputs += [consts[f"A{i}"], consts[f"M{i}"]]
        if use_bn:
            inputs += [consts[f"Q{i}"], consts[f"gamma{i}"], consts[f"beta{i}"]]
            kind = "bn"
        else:
            inputs += [consts[f"bias{i}"]]
            kind = "bias"
        act = "leaky" if (not is_last and args.use_relu) else "sigmoid"
        layer_kinds.append((kind, act))

    OHf, OWf, Cf = consts["_final_hw_c"]
    out_shape_2d = (N * OHf, OWf * Cf)

    kernel = functools.partial(_discriminator_kernel,
                               layer_kinds=tuple(layer_kinds), eps=1e-5, slope=0.2)
    out2d = pl.pallas_call(
        kernel,
        out_shape=jax.ShapeDtypeStruct(out_shape_2d, jnp.float32),
        grid=(1,),
        in_specs=[_full_spec(a.shape) for a in inputs],
        out_specs=_full_spec(out_shape_2d),
        compiler_params=pltpu.CompilerParams(dimension_semantics=("arbitrary",)),
    )(*inputs)
    # Back to NCHW at the module boundary.
    return out2d.reshape(N, OHf, OWf, Cf).transpose(0, 3, 1, 2)


# ----------------------------- pure-JAX reference --------------------------- #

def reference_forward(x, params, args):
    """Pure-JAX reference mirroring the PyTorch module (train-mode BN)."""
    n = len(args.layer_D)
    for i, (_out_ch, _k, s, p) in enumerate(args.layer_D):
        W = params[f"conv{i}_w"]
        b = params[f"conv{i}_b"]
        x = jax.lax.conv_general_dilated(
            x, W, (s, s), [(p, p), (p, p)],
            dimension_numbers=("NCHW", "OIHW", "NCHW"),
            precision=jax.lax.Precision.HIGHEST,
        ) + b.reshape(1, -1, 1, 1)
        is_last = i == n - 1
        if (i > 0) and (not is_last) and args.use_batchnorm:
            mean = jnp.mean(x, axis=(0, 2, 3), keepdims=True)
            var = jnp.mean(jnp.square(x - mean), axis=(0, 2, 3), keepdims=True)
            x = (x - mean) * jax.lax.rsqrt(var + 1e-5)
            x = x * params[f"bn{i}_gamma"].reshape(1, -1, 1, 1) \
                + params[f"bn{i}_beta"].reshape(1, -1, 1, 1)
        if (not is_last) and args.use_relu:
            x = jnp.where(x >= 0, x, 0.2 * x)
        else:
            x = 1.0 / (1.0 + jnp.exp(-x))
    return x


if __name__ == "__main__":
    args = Args()
    key = jax.random.PRNGKey(0)
    key, xk = jax.random.split(key)
    x = jax.random.normal(xk, (2, args.img_channel_num, 16, 16), jnp.float32)
    params = init_params(key, args)

    consts = precompute_constants(params, args, batch=x.shape[0],
                                  height=x.shape[2], width=x.shape[3])

    out = jax.block_until_ready(discriminator_forward(x, consts, args))
    assert out.shape == (2, 1, 1, 1), out.shape

    ref = jax.block_until_ready(reference_forward(x, params, args))
    assert jnp.allclose(out, ref, rtol=1e-4, atol=1e-4), (out, ref)

    print("KERNEL_OK")
</pallas_src>

<mosaic_0001>
module attributes {stable_mosaic.version = 11 : i64} {
  func.func @_discriminator_kernel(%arg0: i32, %arg1: memref<32x48xf32, #tpu.memory_space<vmem>>, %arg2: memref<4x16x32xf32, #tpu.memory_space<vmem>>, %arg3: memref<4x48x128xf32, #tpu.memory_space<vmem>>, %arg4: memref<1x128xf32, #tpu.memory_space<vmem>>, %arg5: memref<4x8x16xf32, #tpu.memory_space<vmem>>, %arg6: memref<4x128x128xf32, #tpu.memory_space<vmem>>, %arg7: memref<128x128xf32, #tpu.memory_space<vmem>>, %arg8: memref<1x128xf32, #tpu.memory_space<vmem>>, %arg9: memref<1x128xf32, #tpu.memory_space<vmem>>, %arg10: memref<4x2x8xf32, #tpu.memory_space<vmem>>, %arg11: memref<4x128x1xf32, #tpu.memory_space<vmem>>, %arg12: memref<1x1xf32, #tpu.memory_space<vmem>>, %arg13: memref<2x1xf32, #tpu.memory_space<vmem>>) attributes {dimension_semantics = [#tpu.dimension_semantics<arbitrary>], iteration_bounds = array<i64: 1>, scalar_prefetch = 0 : i64, scratch_operands = 0 : i64, tpu.core_type = #tpu.core_type<tc>, window_params = [{pipeline_mode = #tpu.pipeline_mode<synchronous>, transform_indices = @transform_0, window_bounds = array<i64: 32, 48>}, {pipeline_mode = #tpu.pipeline_mode<synchronous>, transform_indices = @transform_1, window_bounds = array<i64: 4, 16, 32>}, {pipeline_mode = #tpu.pipeline_mode<synchronous>, transform_indices = @transform_2, window_bounds = array<i64: 4, 48, 128>}, {pipeline_mode = #tpu.pipeline_mode<synchronous>, transform_indices = @transform_3, window_bounds = array<i64: 1, 128>}, {pipeline_mode = #tpu.pipeline_mode<synchronous>, transform_indices = @transform_4, window_bounds = array<i64: 4, 8, 16>}, {pipeline_mode = #tpu.pipeline_mode<synchronous>, transform_indices = @transform_5, window_bounds = array<i64: 4, 128, 128>}, {pipeline_mode = #tpu.pipeline_mode<synchronous>, transform_indices = @transform_6, window_bounds = array<i64: 128, 128>}, {pipeline_mode = #tpu.pipeline_mode<synchronous>, transform_indices = @transform_7, window_bounds = array<i64: 1, 128>}, {pipeline_mode = #tpu.pipeline_mode<synchronous>, transform_indices = @transform_8, window_bounds = array<i64: 1, 128>}, {pipeline_mode = #tpu.pipeline_mode<synchronous>, transform_indices = @transform_9, window_bounds = array<i64: 4, 2, 8>}, {pipeline_mode = #tpu.pipeline_mode<synchronous>, transform_indices = @transform_10, window_bounds = array<i64: 4, 128, 1>}, {pipeline_mode = #tpu.pipeline_mode<synchronous>, transform_indices = @transform_11, window_bounds = array<i64: 1, 1>}, {pipeline_mode = #tpu.pipeline_mode<synchronous>, transform_indices = @transform_12, window_bounds = array<i64: 2, 1>}]} {
    %c0 = arith.constant 0 : index
    %c0_0 = arith.constant 0 : index
    %0 = vector.load %arg1[%c0, %c0_0] : memref<32x48xf32, #tpu.memory_space<vmem>>, vector<32x48xf32>
    %c0_1 = arith.constant 0 : index
    %c0_2 = arith.constant 0 : index
    %c0_3 = arith.constant 0 : index
    %1 = vector.load %arg2[%c0_1, %c0_2, %c0_3] : memref<4x16x32xf32, #tpu.memory_space<vmem>>, vector<1x16x32xf32>
    %2 = vector.shape_cast %1 : vector<1x16x32xf32> to vector<16x32xf32>
    %cst = arith.constant dense<0.000000e+00> : vector<16x48xf32>
    %3 = tpu.matmul %2, %0, %cst {dimension_numbers = #tpu.dot_dimension_numbers<[1], [0], [0], [1], [0, 0, 1, 1], [], []>} : vector<16x32xf32>, vector<32x48xf32>, vector<16x48xf32> -> vector<16x48xf32>
    %c0_4 = arith.constant 0 : index
    %c0_5 = arith.constant 0 : index
    %c0_6 = arith.constant 0 : index
    %4 = vector.load %arg3[%c0_4, %c0_5, %c0_6] : memref<4x48x128xf32, #tpu.memory_space<vmem>>, vector<1x48x128xf32>
    %5 = vector.shape_cast %4 : vector<1x48x128xf32> to vector<48x128xf32>
    %cst_7 = arith.constant dense<0.000000e+00> : vector<16x128xf32>
    %6 = tpu.matmul %3, %5, %cst_7 {dimension_numbers = #tpu.dot_dimension_numbers<[1], [0], [0], [1], [0, 0, 1, 1], [], []>} : vector<16x48xf32>, vector<48x128xf32>, vector<16x128xf32> -> vector<16x128xf32>
    %c1 = arith.constant 1 : index
    %c0_8 = arith.constant 0 : index
    %c0_9 = arith.constant 0 : index
    %7 = vector.load %arg2[%c1, %c0_8, %c0_9] : memref<4x16x32xf32, #tpu.memory_space<vmem>>, vector<1x16x32xf32>
    %8 = vector.shape_cast %7 : vector<1x16x32xf32> to vector<16x32xf32>
    %cst_10 = arith.constant dense<0.000000e+00> : vector<16x48xf32>
    %9 = tpu.matmul %8, %0, %cst_10 {dimension_numbers = #tpu.dot_dimension_numbers<[1], [0], [0], [1], [0, 0, 1, 1], [], []>} : vector<16x32xf32>, vector<32x48xf32>, vector<16x48xf32> -> vector<16x48xf32>
    %c1_11 = arith.constant 1 : index
    %c0_12 = arith.constant 0 : index
    %c0_13 = arith.constant 0 : index
    %10 = vector.load %arg3[%c1_11, %c0_12, %c0_13] : memref<4x48x128xf32, #tpu.memory_space<vmem>>, vector<1x48x128xf32>
    %11 = vector.shape_cast %10 : vector<1x48x128xf32> to vector<48x128xf32>
    %cst_14 = arith.constant dense<0.000000e+00> : vector<16x128xf32>
    %12 = tpu.matmul %9, %11, %cst_14 {dimension_numbers = #tpu.dot_dimension_numbers<[1], [0], [0], [1], [0, 0, 1, 1], [], []>} : vector<16x48xf32>, vector<48x128xf32>, vector<16x128xf32> -> vector<16x128xf32>
    %13 = arith.addf %6, %12 : vector<16x128xf32>
    %c2 = arith.constant 2 : index
    %c0_15 = arith.constant 0 : index
    %c0_16 = arith.constant 0 : index
    %14 = vector.load %arg2[%c2, %c0_15, %c0_16] : memref<4x16x32xf32, #tpu.memory_space<vmem>>, vector<1x16x32xf32>
    %15 = vector.shape_cast %14 : vector<1x16x32xf32> to vector<16x32xf32>
    %cst_17 = arith.constant dense<0.000000e+00> : vector<16x48xf32>
    %16 = tpu.matmul %15, %0, %cst_17 {dimension_numbers = #tpu.dot_dimension_numbers<[1], [0], [0], [1], [0, 0, 1, 1], [], []>} : vector<16x32xf32>, vector<32x48xf32>, vector<16x48xf32> -> vector<16x48xf32>
    %c2_18 = arith.constant 2 : index
    %c0_19 = arith.constant 0 : index
    %c0_20 = arith.constant 0 : index
    %17 = vector.load %arg3[%c2_18, %c0_19, %c0_20] : memref<4x48x128xf32, #tpu.memory_space<vmem>>, vector<1x48x128xf32>
    %18 = vector.shape_cast %17 : vector<1x48x128xf32> to vector<48x128xf32>
    %cst_21 = arith.constant dense<0.000000e+00> : vector<16x128xf32>
    %19 = tpu.matmul %16, %18, %cst_21 {dimension_numbers = #tpu.dot_dimension_numbers<[1], [0], [0], [1], [0, 0, 1, 1], [], []>} : vector<16x48xf32>, vector<48x128xf32>, vector<16x128xf32> -> vector<16x128xf32>
    %20 = arith.addf %13, %19 : vector<16x128xf32>
    %c3 = arith.constant 3 : index
    %c0_22 = arith.constant 0 : index
    %c0_23 = arith.constant 0 : index
    %21 = vector.load %arg2[%c3, %c0_22, %c0_23] : memref<4x16x32xf32, #tpu.memory_space<vmem>>, vector<1x16x32xf32>
    %22 = vector.shape_cast %21 : vector<1x16x32xf32> to vector<16x32xf32>
    %cst_24 = arith.constant dense<0.000000e+00> : vector<16x48xf32>
    %23 = tpu.matmul %22, %0, %cst_24 {dimension_numbers = #tpu.dot_dimension_numbers<[1], [0], [0], [1], [0, 0, 1, 1], [], []>} : vector<16x32xf32>, vector<32x48xf32>, vector<16x48xf32> -> vector<16x48xf32>
    %c3_25 = arith.constant 3 : index
    %c0_26 = arith.constant 0 : index
    %c0_27 = arith.constant 0 : index
    %24 = vector.load %arg3[%c3_25, %c0_26, %c0_27] : memref<4x48x128xf32, #tpu.memory_space<vmem>>, vector<1x48x128xf32>
    %25 = vector.shape_cast %24 : vector<1x48x128xf32> to vector<48x128xf32>
    %cst_28 = arith.constant dense<0.000000e+00> : vector<16x128xf32>
    %26 = tpu.matmul %23, %25, %cst_28 {dimension_numbers = #tpu.dot_dimension_numbers<[1], [0], [0], [1], [0, 0, 1, 1], [], []>} : vector<16x48xf32>, vector<48x128xf32>, vector<16x128xf32> -> vector<16x128xf32>
    %27 = arith.addf %20, %26 : vector<16x128xf32>
    %c0_29 = arith.constant 0 : index
    %c0_30 = arith.constant 0 : index
    %28 = vector.load %arg4[%c0_29, %c0_30] : memref<1x128xf32, #tpu.memory_space<vmem>>, vector<1x128xf32>
    %29 = vector.broadcast %28 : vector<1x128xf32> to vector<16x128xf32>
    %30 = arith.addf %27, %29 : vector<16x128xf32>
    %cst_31 = arith.constant 0.000000e+00 : f32
    %31 = vector.broadcast %cst_31 : f32 to vector<16x128xf32>
    %32 = arith.cmpf oge, %30, %31 : vector<16x128xf32>
    %cst_32 = arith.constant 2.000000e-01 : f32
    %33 = vector.broadcast %cst_32 : f32 to vector<16x128xf32>
    %34 = arith.mulf %33, %30 : vector<16x128xf32>
    %35 = arith.select %32, %30, %34 : vector<16x128xi1>, vector<16x128xf32>
    %c0_33 = arith.constant 0 : index
    %c0_34 = arith.constant 0 : index
    %c0_35 = arith.constant 0 : index
    %36 = vector.load %arg5[%c0_33, %c0_34, %c0_35] : memref<4x8x16xf32, #tpu.memory_space<vmem>>, vector<1x8x16xf32>
    %37 = vector.shape_cast %36 : vector<1x8x16xf32> to vector<8x16xf32>
    %cst_36 = arith.constant dense<0.000000e+00> : vector<8x128xf32>
    %38 = tpu.matmul %37, %35, %cst_36 {dimension_numbers = #tpu.dot_dimension_numbers<[1], [0], [0], [1], [0, 0, 1, 1], [], []>} : vector<8x16xf32>, vector<16x128xf32>, vector<8x128xf32> -> vector<8x128xf32>
    %c0_37 = arith.constant 0 : index
    %c0_38 = arith.constant 0 : index
    %c0_39 = arith.constant 0 : index
    %39 = vector.load %arg6[%c0_37, %c0_38, %c0_39] : memref<4x128x128xf32, #tpu.memory_space<vmem>>, vector<1x128x128xf32>
    %40 = vector.shape_cast %39 : vector<1x128x128xf32> to vector<128x128xf32>
    %cst_40 = arith.constant dense<0.000000e+00> : vector<8x128xf32>
    %41 = tpu.matmul %38, %40, %cst_40 {dimension_numbers = #tpu.dot_dimension_numbers<[1], [0], [0], [1], [0, 0, 1, 1], [], []>} : vector<8x128xf32>, vector<128x128xf32>, vector<8x128xf32> -> vector<8x128xf32>
    %c1_41 = arith.constant 1 : index
    %c0_42 = arith.constant 0 : index
    %c0_43 = arith.constant 0 : index
    %42 = vector.load %arg5[%c1_41, %c0_42, %c0_43] : memref<4x8x16xf32, #tpu.memory_space<vmem>>, vector<1x8x16xf32>
    %43 = vector.shape_cast %42 : vector<1x8x16xf32> to vector<8x16xf32>
    %cst_44 = arith.constant dense<0.000000e+00> : vector<8x128xf32>
    %44 = tpu.matmul %43, %35, %cst_44 {dimension_numbers = #tpu.dot_dimension_numbers<[1], [0], [0], [1], [0, 0, 1, 1], [], []>} : vector<8x16xf32>, vector<16x128xf32>, vector<8x128xf32> -> vector<8x128xf32>
    %c1_45 = arith.constant 1 : index
    %c0_46 = arith.constant 0 : index
    %c0_47 = arith.constant 0 : index
    %45 = vector.load %arg6[%c1_45, %c0_46, %c0_47] : memref<4x128x128xf32, #tpu.memory_space<vmem>>, vector<1x128x128xf32>
    %46 = vector.shape_cast %45 : vector<1x128x128xf32> to vector<128x128xf32>
    %cst_48 = arith.constant dense<0.000000e+00> : vector<8x128xf32>
    %47 = tpu.matmul %44, %46, %cst_48 {dimension_numbers = #tpu.dot_dimension_numbers<[1], [0], [0], [1], [0, 0, 1, 1], [], []>} : vector<8x128xf32>, vector<128x128xf32>, vector<8x128xf32> -> vector<8x128xf32>
    %48 = arith.addf %41, %47 : vector<8x128xf32>
    %c2_49 = arith.constant 2 : index
    %c0_50 = arith.constant 0 : index
    %c0_51 = arith.constant 0 : index
    %49 = vector.load %arg5[%c2_49, %c0_50, %c0_51] : memref<4x8x16xf32, #tpu.memory_space<vmem>>, vector<1x8x16xf32>
    %50 = vector.shape_cast %49 : vector<1x8x16xf32> to vector<8x16xf32>
    %cst_52 = arith.constant dense<0.000000e+00> : vector<8x128xf32>
    %51 = tpu.matmul %50, %35, %cst_52 {dimension_numbers = #tpu.dot_dimension_numbers<[1], [0], [0], [1], [0, 0, 1, 1], [], []>} : vector<8x16xf32>, vector<16x128xf32>, vector<8x128xf32> -> vector<8x128xf32>
    %c2_53 = arith.constant 2 : index
    %c0_54 = arith.constant 0 : index
    %c0_55 = arith.constant 0 : index
    %52 = vector.load %arg6[%c2_53, %c0_54, %c0_55] : memref<4x128x128xf32, #tpu.memory_space<vmem>>, vector<1x128x128xf32>
    %53 = vector.shape_cast %52 : vector<1x128x128xf32> to vector<128x128xf32>
    %cst_56 = arith.constant dense<0.000000e+00> : vector<8x128xf32>
    %54 = tpu.matmul %51, %53, %cst_56 {dimension_numbers = #tpu.dot_dimension_numbers<[1], [0], [0], [1], [0, 0, 1, 1], [], []>} : vector<8x128xf32>, vector<128x128xf32>, vector<8x128xf32> -> vector<8x128xf32>
    %55 = arith.addf %48, %54 : vector<8x128xf32>
    %c3_57 = arith.constant 3 : index
    %c0_58 = arith.constant 0 : index
    %c0_59 = arith.constant 0 : index
    %56 = vector.load %arg5[%c3_57, %c0_58, %c0_59] : memref<4x8x16xf32, #tpu.memory_space<vmem>>, vector<1x8x16xf32>
    %57 = vector.shape_cast %56 : vector<1x8x16xf32> to vector<8x16xf32>
    %cst_60 = arith.constant dense<0.000000e+00> : vector<8x128xf32>
    %58 = tpu.matmul %57, %35, %cst_60 {dimension_numbers = #tpu.dot_dimension_numbers<[1], [0], [0], [1], [0, 0, 1, 1], [], []>} : vector<8x16xf32>, vector<16x128xf32>, vector<8x128xf32> -> vector<8x128xf32>
    %c3_61 = arith.constant 3 : index
    %c0_62 = arith.constant 0 : index
    %c0_63 = arith.constant 0 : index
    %59 = vector.load %arg6[%c3_61, %c0_62, %c0_63] : memref<4x128x128xf32, #tpu.memory_space<vmem>>, vector<1x128x128xf32>
    %60 = vector.shape_cast %59 : vector<1x128x128xf32> to vector<128x128xf32>
    %cst_64 = arith.constant dense<0.000000e+00> : vector<8x128xf32>
    %61 = tpu.matmul %58, %60, %cst_64 {dimension_numbers = #tpu.dot_dimension_numbers<[1], [0], [0], [1], [0, 0, 1, 1], [], []>} : vector<8x128xf32>, vector<128x128xf32>, vector<8x128xf32> -> vector<8x128xf32>
    %62 = arith.addf %55, %61 : vector<8x128xf32>
    %c0_65 = arith.constant 0 : index
    %c0_66 = arith.constant 0 : index
    %63 = vector.load %arg7[%c0_65, %c0_66] : memref<128x128xf32, #tpu.memory_space<vmem>>, vector<128x128xf32>
    %cst_67 = arith.constant dense<0.000000e+00> : vector<128xf32>
    %64 = vector.multi_reduction <add>, %62, %cst_67 [0] : vector<8x128xf32> to vector<128xf32>
    %65 = vector.shape_cast %64 : vector<128xf32> to vector<1x128xf32>
    %cst_68 = arith.constant dense<0.000000e+00> : vector<1x128xf32>
    %66 = tpu.matmul %65, %63, %cst_68 {dimension_numbers = #tpu.dot_dimension_numbers<[1], [0], [0], [1], [0, 0, 1, 1], [], []>} : vector<1x128xf32>, vector<128x128xf32>, vector<1x128xf32> -> vector<1x128xf32>
    %67 = vector.broadcast %66 : vector<1x128xf32> to vector<8x128xf32>
    %68 = arith.subf %62, %67 : vector<8x128xf32>
    %69 = arith.mulf %68, %68 : vector<8x128xf32>
    %cst_69 = arith.constant dense<0.000000e+00> : vector<128xf32>
    %70 = vector.multi_reduction <add>, %69, %cst_69 [0] : vector<8x128xf32> to vector<128xf32>
    %71 = vector.shape_cast %70 : vector<128xf32> to vector<1x128xf32>
    %cst_70 = arith.constant dense<0.000000e+00> : vector<1x128xf32>
    %72 = tpu.matmul %71, %63, %cst_70 {dimension_numbers = #tpu.dot_dimension_numbers<[1], [0], [0], [1], [0, 0, 1, 1], [], []>} : vector<1x128xf32>, vector<128x128xf32>, vector<1x128xf32> -> vector<1x128xf32>
    %cst_71 = arith.constant 9.99999974E-6 : f32
    %73 = vector.broadcast %cst_71 : f32 to vector<1x128xf32>
    %74 = arith.addf %72, %73 : vector<1x128xf32>
    %75 = math.rsqrt %74 : vector<1x128xf32>
    %c0_72 = arith.constant 0 : index
    %c0_73 = arith.constant 0 : index
    %76 = vector.load %arg8[%c0_72, %c0_73] : memref<1x128xf32, #tpu.memory_space<vmem>>, vector<1x128xf32>
    %77 = arith.mulf %75, %76 : vector<1x128xf32>
    %78 = vector.broadcast %77 : vector<1x128xf32> to vector<8x128xf32>
    %79 = arith.mulf %68, %78 : vector<8x128xf32>
    %c0_74 = arith.constant 0 : index
    %c0_75 = arith.constant 0 : index
    %80 = vector.load %arg9[%c0_74, %c0_75] : memref<1x128xf32, #tpu.memory_space<vmem>>, vector<1x128xf32>
    %81 = vector.broadcast %80 : vector<1x128xf32> to vector<8x128xf32>
    %82 = arith.addf %79, %81 : vector<8x128xf32>
    %cst_76 = arith.constant 0.000000e+00 : f32
    %83 = vector.broadcast %cst_76 : f32 to vector<8x128xf32>
    %84 = arith.cmpf oge, %82, %83 : vector<8x128xf32>
    %cst_77 = arith.constant 2.000000e-01 : f32
    %85 = vector.broadcast %cst_77 : f32 to vector<8x128xf32>
    %86 = arith.mulf %85, %82 : vector<8x128xf32>
    %87 = arith.select %84, %82, %86 : vector<8x128xi1>, vector<8x128xf32>
    %c0_78 = arith.constant 0 : index
    %c0_79 = arith.constant 0 : index
    %c0_80 = arith.constant 0 : index
    %88 = vector.load %arg10[%c0_78, %c0_79, %c0_80] : memref<4x2x8xf32, #tpu.memory_space<vmem>>, vector<1x2x8xf32>
    %89 = vector.shape_cast %88 : vector<1x2x8xf32> to vector<2x8xf32>
    %cst_81 = arith.constant dense<0.000000e+00> : vector<2x128xf32>
    %90 = tpu.matmul %89, %87, %cst_81 {dimension_numbers = #tpu.dot_dimension_numbers<[1], [0], [0], [1], [0, 0, 1, 1], [], []>} : vector<2x8xf32>, vector<8x128xf32>, vector<2x128xf32> -> vector<2x128xf32>
    %c0_82 = arith.constant 0 : index
    %c0_83 = arith.constant 0 : index
    %c0_84 = arith.constant 0 : index
    %91 = vector.load %arg11[%c0_82, %c0_83, %c0_84] : memref<4x128x1xf32, #tpu.memory_space<vmem>>, vector<1x128x1xf32>
    %92 = vector.shape_cast %91 : vector<1x128x1xf32> to vector<128x1xf32>
    %cst_85 = arith.constant dense<0.000000e+00> : vector<2x1xf32>
    %93 = tpu.matmul %90, %92, %cst_85 {dimension_numbers = #tpu.dot_dimension_numbers<[1], [0], [0], [1], [0, 0, 1, 1], [], []>} : vector<2x128xf32>, vector<128x1xf32>, vector<2x1xf32> -> vector<2x1xf32>
    %c1_86 = arith.constant 1 : index
    %c0_87 = arith.constant 0 : index
    %c0_88 = arith.constant 0 : index
    %94 = vector.load %arg10[%c1_86, %c0_87, %c0_88] : memref<4x2x8xf32, #tpu.memory_space<vmem>>, vector<1x2x8xf32>
    %95 = vector.shape_cast %94 : vector<1x2x8xf32> to vector<2x8xf32>
    %cst_89 = arith.constant dense<0.000000e+00> : vector<2x128xf32>
    %96 = tpu.matmul %95, %87, %cst_89 {dimension_numbers = #tpu.dot_dimension_numbers<[1], [0], [0], [1], [0, 0, 1, 1], [], []>} : vector<2x8xf32>, vector<8x128xf32>, vector<2x128xf32> -> vector<2x128xf32>
    %c1_90 = arith.constant 1 : index
    %c0_91 = arith.constant 0 : index
    %c0_92 = arith.constant 0 : index
    %97 = vector.load %arg11[%c1_90, %c0_91, %c0_92] : memref<4x128x1xf32, #tpu.memory_space<vmem>>, vector<1x128x1xf32>
    %98 = vector.shape_cast %97 : vector<1x128x1xf32> to vector<128x1xf32>
    %cst_93 = arith.constant dense<0.000000e+00> : vector<2x1xf32>
    %99 = tpu.matmul %96, %98, %cst_93 {dimension_numbers = #tpu.dot_dimension_numbers<[1], [0], [0], [1], [0, 0, 1, 1], [], []>} : vector<2x128xf32>, vector<128x1xf32>, vector<2x1xf32> -> vector<2x1xf32>
    %100 = arith.addf %93, %99 : vector<2x1xf32>
    %c2_94 = arith.constant 2 : index
    %c0_95 = arith.constant 0 : index
    %c0_96 = arith.constant 0 : index
    %101 = vector.load %arg10[%c2_94, %c0_95, %c0_96] : memref<4x2x8xf32, #tpu.memory_space<vmem>>, vector<1x2x8xf32>
    %102 = vector.shape_cast %101 : vector<1x2x8xf32> to vector<2x8xf32>
    %cst_97 = arith.constant dense<0.000000e+00> : vector<2x128xf32>
    %103 = tpu.matmul %102, %87, %cst_97 {dimension_numbers = #tpu.dot_dimension_numbers<[1], [0], [0], [1], [0, 0, 1, 1], [], []>} : vector<2x8xf32>, vector<8x128xf32>, vector<2x128xf32> -> vector<2x128xf32>
    %c2_98 = arith.constant 2 : index
    %c0_99 = arith.constant 0 : index
    %c0_100 = arith.constant 0 : index
    %104 = vector.load %arg11[%c2_98, %c0_99, %c0_100] : memref<4x128x1xf32, #tpu.memory_space<vmem>>, vector<1x128x1xf32>
    %105 = vector.shape_cast %104 : vector<1x128x1xf32> to vector<128x1xf32>
    %cst_101 = arith.constant dense<0.000000e+00> : vector<2x1xf32>
    %106 = tpu.matmul %103, %105, %cst_101 {dimension_numbers = #tpu.dot_dimension_numbers<[1], [0], [0], [1], [0, 0, 1, 1], [], []>} : vector<2x128xf32>, vector<128x1xf32>, vector<2x1xf32> -> vector<2x1xf32>
    %107 = arith.addf %100, %106 : vector<2x1xf32>
    %c3_102 = arith.constant 3 : index
    %c0_103 = arith.constant 0 : index
    %c0_104 = arith.constant 0 : index
    %108 = vector.load %arg10[%c3_102, %c0_103, %c0_104] : memref<4x2x8xf32, #tpu.memory_space<vmem>>, vector<1x2x8xf32>
    %109 = vector.shape_cast %108 : vector<1x2x8xf32> to vector<2x8xf32>
    %cst_105 = arith.constant dense<0.000000e+00> : vector<2x128xf32>
    %110 = tpu.matmul %109, %87, %cst_105 {dimension_numbers = #tpu.dot_dimension_numbers<[1], [0], [0], [1], [0, 0, 1, 1], [], []>} : vector<2x8xf32>, vector<8x128xf32>, vector<2x128xf32> -> vector<2x128xf32>
    %c3_106 = arith.constant 3 : index
    %c0_107 = arith.constant 0 : index
    %c0_108 = arith.constant 0 : index
    %111 = vector.load %arg11[%c3_106, %c0_107, %c0_108] : memref<4x128x1xf32, #tpu.memory_space<vmem>>, vector<1x128x1xf32>
    %112 = vector.shape_cast %111 : vector<1x128x1xf32> to vector<128x1xf32>
    %cst_109 = arith.constant dense<0.000000e+00> : vector<2x1xf32>
    %113 = tpu.matmul %110, %112, %cst_109 {dimension_numbers = #tpu.dot_dimension_numbers<[1], [0], [0], [1], [0, 0, 1, 1], [], []>} : vector<2x128xf32>, vector<128x1xf32>, vector<2x1xf32> -> vector<2x1xf32>
    %114 = arith.addf %107, %113 : vector<2x1xf32>
    %c0_110 = arith.constant 0 : index
    %c0_111 = arith.constant 0 : index
    %115 = vector.load %arg12[%c0_110, %c0_111] : memref<1x1xf32, #tpu.memory_space<vmem>>, vector<1x1xf32>
    %116 = vector.broadcast %115 : vector<1x1xf32> to vector<2x1xf32>
    %117 = arith.addf %114, %116 : vector<2x1xf32>
    %cst_112 = arith.constant 0.000000e+00 : f32
    %118 = vector.broadcast %cst_112 : f32 to vector<2x1xf32>
    %119 = arith.subf %118, %117 : vector<2x1xf32>
    %120 = math.exp %119 : vector<2x1xf32>
    %cst_113 = arith.constant 1.000000e+00 : f32
    %121 = vector.broadcast %cst_113 : f32 to vector<2x1xf32>
    %122 = arith.addf %121, %120 : vector<2x1xf32>
    %cst_114 = arith.constant 1.000000e+00 : f32
    %123 = vector.broadcast %cst_114 : f32 to vector<2x1xf32>
    %124 = arith.divf %123, %122 : vector<2x1xf32>
    %c0_115 = arith.constant 0 : index
    %c0_116 = arith.constant 0 : index
    %125 = vector.load %arg13[%c0_115, %c0_116] : memref<2x1xf32, #tpu.memory_space<vmem>>, vector<2x1xf32>
    tpu.vector_store %arg13[%c0_115, %c0_116], %124 {strides = array<i32>} : memref<2x1xf32, #tpu.memory_space<vmem>>, vector<2x1xf32>,
    return
  }
  func.func @transform_0(%arg0: i32) -> (i32, i32) {
    %c0_i32 = arith.constant 0 : i32
    %c0_i32_0 = arith.constant 0 : i32
    %c0_i32_1 = arith.constant 0 : i32
    return %c0_i32, %c0_i32_0 : i32, i32
  }
  func.func @transform_1(%arg0: i32) -> (i32, i32, i32) {
    %c0_i32 = arith.constant 0 : i32
    %c0_i32_0 = arith.constant 0 : i32
    %c0_i32_1 = arith.constant 0 : i32
    %c0_i32_2 = arith.constant 0 : i32
    return %c0_i32, %c0_i32_0, %c0_i32_1 : i32, i32, i32
  }
  func.func @transform_2(%arg0: i32) -> (i32, i32, i32) {
    %c0_i32 = arith.constant 0 : i32
    %c0_i32_0 = arith.constant 0 : i32
    %c0_i32_1 = arith.constant 0 : i32
    %c0_i32_2 = arith.constant 0 : i32
    return %c0_i32, %c0_i32_0, %c0_i32_1 : i32, i32, i32
  }
  func.func @transform_3(%arg0: i32) -> (i32, i32) {
    %c0_i32 = arith.constant 0 : i32
    %c0_i32_0 = arith.constant 0 : i32
    %c0_i32_1 = arith.constant 0 : i32
    return %c0_i32, %c0_i32_0 : i32, i32
  }
  func.func @transform_4(%arg0: i32) -> (i32, i32, i32) {
    %c0_i32 = arith.constant 0 : i32
    %c0_i32_0 = arith.constant 0 : i32
    %c0_i32_1 = arith.constant 0 : i32
    %c0_i32_2 = arith.constant 0 : i32
    return %c0_i32, %c0_i32_0, %c0_i32_1 : i32, i32, i32
  }
  func.func @transform_5(%arg0: i32) -> (i32, i32, i32) {
    %c0_i32 = arith.constant 0 : i32
    %c0_i32_0 = arith.constant 0 : i32
    %c0_i32_1 = arith.constant 0 : i32
    %c0_i32_2 = arith.constant 0 : i32
    return %c0_i32, %c0_i32_0, %c0_i32_1 : i32, i32, i32
  }
  func.func @transform_6(%arg0: i32) -> (i32, i32) {
    %c0_i32 = arith.constant 0 : i32
    %c0_i32_0 = arith.constant 0 : i32
    %c0_i32_1 = arith.constant 0 : i32
    return %c0_i32, %c0_i32_0 : i32, i32
  }
  func.func @transform_7(%arg0: i32) -> (i32, i32) {
    %c0_i32 = arith.constant 0 : i32
    %c0_i32_0 = arith.constant 0 : i32
    %c0_i32_1 = arith.constant 0 : i32
    return %c0_i32, %c0_i32_0 : i32, i32
  }
  func.func @transform_8(%arg0: i32) -> (i32, i32) {
    %c0_i32 = arith.constant 0 : i32
    %c0_i32_0 = arith.constant 0 : i32
    %c0_i32_1 = arith.constant 0 : i32
    return %c0_i32, %c0_i32_0 : i32, i32
  }
  func.func @transform_9(%arg0: i32) -> (i32, i32, i32) {
    %c0_i32 = arith.constant 0 : i32
    %c0_i32_0 = arith.constant 0 : i32
    %c0_i32_1 = arith.constant 0 : i32
    %c0_i32_2 = arith.constant 0 : i32
    return %c0_i32, %c0_i32_0, %c0_i32_1 : i32, i32, i32
  }
  func.func @transform_10(%arg0: i32) -> (i32, i32, i32) {
    %c0_i32 = arith.constant 0 : i32
    %c0_i32_0 = arith.constant 0 : i32
    %c0_i32_1 = arith.constant 0 : i32
    %c0_i32_2 = arith.constant 0 : i32
    return %c0_i32, %c0_i32_0, %c0_i32_1 : i32, i32, i32
  }
  func.func @transform_11(%arg0: i32) -> (i32, i32) {
    %c0_i32 = arith.constant 0 : i32
    %c0_i32_0 = arith.constant 0 : i32
    %c0_i32_1 = arith.constant 0 : i32
    return %c0_i32, %c0_i32_0 : i32, i32
  }
  func.func @transform_12(%arg0: i32) -> (i32, i32) {
    %c0_i32 = arith.constant 0 : i32
    %c0_i32_0 = arith.constant 0 : i32
    %c0_i32_1 = arith.constant 0 : i32
    return %c0_i32, %c0_i32_0 : i32, i32
  }
}

</mosaic_0001>

<llo_original>
// kernel: tpu_custom_call.1
$region0: #{tpu_custom_call.1}
  #allocation0 [shape = 'u32[]', space=smem, size = 0x4, offset = 0x4, fixed_abs, tag = 'smem constant byte address 0x4 - core index']
  #allocation1 [shape = 'u32[72,128]{1,0:T(1,128)}', space=vmem, size = 0x9000, scoped, tag = 'internal scratch']
  #allocation2 [shape = 'f32[1,1]{1,0:T(1,128)S(1)}', space=vmem, size = 0x200, scoped, tag = 'scoped memory for tpu_custom_call.1']
  %s0 = inlined_call_operand.hbm [shape: f32[32,48], index: 0, kind: input, shape index: {}]
  %s1 = inlined_call_operand.hbm [shape: f32[4,16,32], index: 1, kind: input, shape index: {}]
  %s2 = inlined_call_operand.hbm [shape: f32[4,48,128], index: 2, kind: input, shape index: {}]
  %s3 = inlined_call_operand.vmem [shape: f32[1,128], index: 3, kind: input, shape index: {}]
  %s4 = inlined_call_operand.hbm [shape: f32[4,8,16], index: 4, kind: input, shape index: {}]
  %s5 = inlined_call_operand.vmem [shape: f32[4,128,128], index: 5, kind: input, shape index: {}]
  %s6 = inlined_call_operand.hbm [shape: f32[128,128], index: 6, kind: input, shape index: {}]
  %s7 = inlined_call_operand.vmem [shape: f32[1,128], index: 7, kind: input, shape index: {}]
  %s8 = inlined_call_operand.vmem [shape: f32[1,128], index: 8, kind: input, shape index: {}]
  %s9 = inlined_call_operand.hbm [shape: f32[4,2,8], index: 9, kind: input, shape index: {}]
  %s10 = inlined_call_operand.vmem [shape: f32[4,128,1], index: 10, kind: input, shape index: {}]
  %s11 = inlined_call_operand.<no memory space> [shape: f32[1,1], index: 11, kind: input, shape index: {}]
  %s12 = inlined_call_operand.vmem [shape: f32[2,1], index: 12, kind: output, shape index: {}]
  %s13 = sld [smem:[#allocation0]]
  $region82: #{tpu_custom_call.1} parent=0
    _
  %s15 = ssub.s32 1, %s13
  %s16 = scalar_select 0, %s15, %s13
  %v17 = vstv %s11
  %18 = vst [vmem:[#allocation2] sm:$0x1] %v17
  $region1: #{tpu_custom_call.1} parent=0
    #allocation3 [shape = 'u8[16384]{0}', space=vmem, size = 0x4000, scoped, tag = 'input window, operand 0, single buffered']
    #allocation4 [shape = 's32[1]{0}', space=sflag, size = 0x4, scoped, tag = 'scoped memory for tpu_custom_call.1']
    #allocation5 [shape = 'u8[32768]{0}', space=vmem, size = 0x8000, scoped, tag = 'input window, operand 1, single buffered']
    #allocation6 [shape = 's32[1]{0}', space=sflag, size = 0x4, scoped, tag = 'scoped memory for tpu_custom_call.1']
    #allocation7 [shape = 'u8[98304]{0}', space=vmem, size = 0x18000, scoped, tag = 'input window, operand 2, single buffered']
    #allocation8 [shape = 'u8[16384]{0}', space=vmem, size = 0x4000, scoped, tag = 'input window, operand 4, single buffered']
    #allocation9 [shape = 's32[1]{0}', space=sflag, size = 0x4, scoped, tag = 'scoped memory for tpu_custom_call.1']
    #allocation10 [shape = 'u8[65536]{0}', space=vmem, size = 0x10000, scoped, tag = 'input window, operand 6, single buffered']
    #allocation11 [shape = 'u8[4096]{0}', space=vmem, size = 0x1000, scoped, tag = 'input window, operand 9, single buffered']
    #allocation12 [shape = 's32[1]{0}', space=sflag, size = 0x4, scoped, tag = 'scoped memory for tpu_custom_call.1']
    %19 = vsyncpa [#allocation4], 0
    %20 = vsyncpa [#allocation6], 0
    %21 = vsyncpa [#allocation9], 0
    %22 = vsyncpa [#allocation12], 0
    // Predicated region
    $region2: #{tpu_custom_call.1} parent=1 // pred_check
      _
    $region3: #{tpu_custom_call.1} parent=1 // pred_check_branch
      %24 = sbr.rel (0) target = $region5
    $region4: #{tpu_custom_call.1} parent=1 // pred_region
      %26 = vsyncadd [#allocation4], 0
      %s27 = sshll.u32 %s0, 4
      %s28 = int_to_ptr.hbm [resolvable:$true] %s27
      %s29 = sshll.u32 [#allocation3], 4
      %s30 = int_to_ptr.vmem [resolvable:$true] %s29
      %35 = dma.hbm_to_vmem [thread:$0]  %s28, 512, %s30, [#allocation4], 128, 128, 8
    $region5: #{tpu_custom_call.1} parent=1 // pred_fallthru
      _
    // Predicated region
    $region6: #{tpu_custom_call.1} parent=1 // pred_check
      _
    $region7: #{tpu_custom_call.1} parent=1 // pred_check_branch
      %37 = sbr.rel (0) target = $region9
    $region8: #{tpu_custom_call.1} parent=1 // pred_region
      %39 = vsyncadd [#allocation6], 0
      %s40 = sshll.u32 %s1, 4
      %s41 = int_to_ptr.hbm [resolvable:$true] %s40
      %s42 = sshll.u32 [#allocation5], 4
      %s43 = int_to_ptr.vmem [resolvable:$true] %s42
      %48 = dma.hbm_to_vmem [thread:$0]  %s41, 1024, %s43, [#allocation6], 128, 128, 8
    $region9: #{tpu_custom_call.1} parent=1 // pred_fallthru
      _
    // Predicated region
    $region10: #{tpu_custom_call.1} parent=1 // pred_check
      _
    $region11: #{tpu_custom_call.1} parent=1 // pred_check_branch
      %50 = sbr.rel (0) target = $region13
    $region12: #{tpu_custom_call.1} parent=1 // pred_region
      %52 = vsyncadd [#allocation6], 0
      %s53 = sshll.u32 %s2, 4
      %s54 = int_to_ptr.hbm [resolvable:$true] %s53
      %s55 = sshll.u32 [#allocation7], 4
      %s56 = int_to_ptr.vmem [resolvable:$true] %s55
      %61 = dma.hbm_to_vmem [thread:$0]  %s54, 3072, %s56, [#allocation6], 128, 128, 8
    $region13: #{tpu_custom_call.1} parent=1 // pred_fallthru
      _
    // Predicated region
    $region14: #{tpu_custom_call.1} parent=1 // pred_check
      _
    $region15: #{tpu_custom_call.1} parent=1 // pred_check_branch
      %63 = sbr.rel (0) target = $region17
    $region16: #{tpu_custom_call.1} parent=1 // pred_region
      _
    $region17: #{tpu_custom_call.1} parent=1 // pred_fallthru
      _
    // Predicated region
    $region18: #{tpu_custom_call.1} parent=1 // pred_check
      _
    $region19: #{tpu_custom_call.1} parent=1 // pred_check_branch
      %65 = sbr.rel (0) target = $region21
    $region20: #{tpu_custom_call.1} parent=1 // pred_region
      %67 = vsyncadd [#allocation9], 0
      %s68 = sshll.u32 %s4, 4
      %s69 = int_to_ptr.hbm [resolvable:$true] %s68
      %s70 = sshll.u32 [#allocation8], 4
      %s71 = int_to_ptr.vmem [resolvable:$true] %s70
      %76 = dma.hbm_to_vmem [thread:$0]  %s69, 512, %s71, [#allocation9], 128, 128, 8
    $region21: #{tpu_custom_call.1} parent=1 // pred_fallthru
      _
    // Predicated region
    $region22: #{tpu_custom_call.1} parent=1 // pred_check
      _
    $region23: #{tpu_custom_call.1} parent=1 // pred_check_branch
      %78 = sbr.rel (0) target = $region25
    $region24: #{tpu_custom_call.1} parent=1 // pred_region
      _
    $region25: #{tpu_custom_call.1} parent=1 // pred_fallthru
      _
    // Predicated region
    $region26: #{tpu_custom_call.1} parent=1 // pred_check
      _
    $region27: #{tpu_custom_call.1} parent=1 // pred_check_branch
      %80 = sbr.rel (0) target = $region29
    $region28: #{tpu_custom_call.1} parent=1 // pred_region
      %82 = vsyncadd [#allocation9], 0
      %s83 = sshll.u32 %s6, 4
      %s84 = int_to_ptr.hbm [resolvable:$true] %s83
      %s85 = sshll.u32 [#allocation10], 4
      %s86 = int_to_ptr.vmem [resolvable:$true] %s85
      %91 = dma.hbm_to_vmem [thread:$0]  %s84, 2048, %s86, [#allocation9], 128, 128, 8
    $region29: #{tpu_custom_call.1} parent=1 // pred_fallthru
      _
    // Predicated region
    $region30: #{tpu_custom_call.1} parent=1 // pred_check
      _
    $region31: #{tpu_custom_call.1} parent=1 // pred_check_branch
      %93 = sbr.rel (0) target = $region33
    $region32: #{tpu_custom_call.1} parent=1 // pred_region
      _
    $region33: #{tpu_custom_call.1} parent=1 // pred_fallthru
      _
    // Predicated region
    $region34: #{tpu_custom_call.1} parent=1 // pred_check
      _
    $region35: #{tpu_custom_call.1} parent=1 // pred_check_branch
      %95 = sbr.rel (0) target = $region37
    $region36: #{tpu_custom_call.1} parent=1 // pred_region
      _
    $region37: #{tpu_custom_call.1} parent=1 // pred_fallthru
      _
    // Predicated region
    $region38: #{tpu_custom_call.1} parent=1 // pred_check
      _
    $region39: #{tpu_custom_call.1} parent=1 // pred_check_branch
      %97 = sbr.rel (0) target = $region41
    $region40: #{tpu_custom_call.1} parent=1 // pred_region
      %99 = vsyncadd [#allocation12], 0
      %s100 = sshll.u32 %s9, 4
      %s101 = int_to_ptr.hbm [resolvable:$true] %s100
      %s102 = sshll.u32 [#allocation11], 4
      %s103 = int_to_ptr.vmem [resolvable:$true] %s102
      %108 = dma.hbm_to_vmem [thread:$0]  %s101, 128, %s103, [#allocation12], 32, 32, 2
    $region41: #{tpu_custom_call.1} parent=1 // pred_fallthru
      _
    // Predicated region
    $region42: #{tpu_custom_call.1} parent=1 // pred_check
      _
    $region43: #{tpu_custom_call.1} parent=1 // pred_check_branch
      %110 = sbr.rel (0) target = $region45
    $region44: #{tpu_custom_call.1} parent=1 // pred_region
      _
    $region45: #{tpu_custom_call.1} parent=1 // pred_fallthru
      _
    // Predicated region
    $region46: #{tpu_custom_call.1} parent=1 // pred_check
      _
    $region47: #{tpu_custom_call.1} parent=1 // pred_check_branch
      %112 = sbr.rel (0) target = $region49
    $region48: #{tpu_custom_call.1} parent=1 // pred_region
      _
    $region49: #{tpu_custom_call.1} parent=1 // pred_fallthru
      _
    // Predicated region
    $region50: #{tpu_custom_call.1} parent=1 // pred_check
      _
    $region51: #{tpu_custom_call.1} parent=1 // pred_check_branch
      %114 = sbr.rel (0) target = $region53
    $region52: #{tpu_custom_call.1} parent=1 // pred_region
      %116 = dma.done [#allocation4], 512
    $region53: #{tpu_custom_call.1} parent=1 // pred_fallthru
      _
    // Predicated region
    $region54: #{tpu_custom_call.1} parent=1 // pred_check
      _
    $region55: #{tpu_custom_call.1} parent=1 // pred_check_branch
      %118 = sbr.rel (0) target = $region57
    $region56: #{tpu_custom_call.1} parent=1 // pred_region
      %120 = dma.done [#allocation6], 1024
    $region57: #{tpu_custom_call.1} parent=1 // pred_fallthru
      _
    // Predicated region
    $region58: #{tpu_custom_call.1} parent=1 // pred_check
      _
    $region59: #{tpu_custom_call.1} parent=1 // pred_check_branch
      %122 = sbr.rel (0) target = $region61
    $region60: #{tpu_custom_call.1} parent=1 // pred_region
      %124 = dma.done [#allocation6], 3072
    $region61: #{tpu_custom_call.1} parent=1 // pred_fallthru
      _
    // Predicated region
    $region62: #{tpu_custom_call.1} parent=1 // pred_check
      _
    $region63: #{tpu_custom_call.1} parent=1 // pred_check_branch
      %126 = sbr.rel (0) target = $region65
    $region64: #{tpu_custom_call.1} parent=1 // pred_region
      %128 = dma.done [#allocation9], 512
    $region65: #{tpu_custom_call.1} parent=1 // pred_fallthru
      _
    // Predicated region
    $region66: #{tpu_custom_call.1} parent=1 // pred_check
      _
    $region67: #{tpu_custom_call.1} parent=1 // pred_check_branch
      %130 = sbr.rel (0) target = $region69
    $region68: #{tpu_custom_call.1} parent=1 // pred_region
      %132 = dma.done [#allocation9], 2048
    $region69: #{tpu_custom_call.1} parent=1 // pred_fallthru
      _
    // Predicated region
    $region70: #{tpu_custom_call.1} parent=1 // pred_check
      _
    $region71: #{tpu_custom_call.1} parent=1 // pred_check_branch
      %134 = sbr.rel (0) target = $region73
    $region72: #{tpu_custom_call.1} parent=1 // pred_region
      %136 = dma.done [#allocation12], 128
    $region73: #{tpu_custom_call.1} parent=1 // pred_fallthru
      _
    %v137 = vld [vmem:[#allocation3] sm:$0xff]
    %v138 = vld [vmem:[#allocation3 + $0x8] sm:$0xff]
    %v139 = vld [vmem:[#allocation3 + $0x10] sm:$0xff]
    %v140 = vld [vmem:[#allocation3 + $0x18] sm:$0xff]
    %v141 = vld [vmem:[#allocation5] sm:$0xff]
    %v142 = vld [vmem:[#allocation5 + $0x8] sm:$0xff]
    %vm143 = vcmask 261120
    %v145 = vsel %vm143, %v141, 0
    %v148 = vsel %vm143, %v142, 0
    %150 = vmatpush.msra.mxu0 0.0
    %151 = vmatpush.msra.mxu0 0.0
    %152 = vmatpush.msra.mxu0 0.0
    %153 = vmatpush.msra.mxu0 0.0
    %154 = vmatpush.msra.mxu0 0.0
    %155 = vmatpush.msra.mxu0 0.0
    %156 = vmatpush.msra.mxu0 0.0
    %157 = vmatpush.msra.mxu0 0.0
    %158 = vmatpush.msra.mxu0 0.0
    %159 = vmatpush.msra.mxu0 0.0
    %160 = vmatpush.msra.mxu0 0.0
    %161 = vmatpush.msra.mxu0 0.0
    %162 = vmatpush.msra.mxu0 %v140
    %163 = vmatpush.msra.mxu0 %v139
    %164 = vmatpush.msra.mxu0 %v138
    %165 = vmatpush.msra.mxu0 %v137
    %166 = vmatmul.f32.gmra.mxu0 %v145
    %v167 = vpop.f32.mrf.mxu0
    %v168 = vadd.f32 0.0, %v167
    %169 = vmatmul.f32.gmra.mxu0 %v148
    %v170 = vpop.f32.mrf.mxu0
    %v171 = vadd.f32 0.0, %v170
    %172 = vdwg.mxu0
    %v173 = vld [vmem:[#allocation7] sm:$0xff]
    %v174 = vld [vmem:[#allocation7 + $0x8] sm:$0xff]
    %v175 = vld [vmem:[#allocation7 + $0x10] sm:$0xff]
    %v176 = vld [vmem:[#allocation7 + $0x18] sm:$0xff]
    %v177 = vld [vmem:[#allocation7 + $0x20] sm:$0xff]
    %v178 = vld [vmem:[#allocation7 + $0x28] sm:$0xff]
    %s179 = scalar_lea.vmem [#allocation5], 16
    %v180 = vld [vmem:[%s179] sm:$0xff]
    %v181 = vld [vmem:[%s179 + $0x8] sm:$0xff]
    %v183 = vsel %vm143, %v180, 0
    %v186 = vsel %vm143, %v181, 0
    %188 = vmatpush.msra.mxu0 0.0
    %189 = vmatpush.msra.mxu0 0.0
    %190 = vmatpush.msra.mxu0 0.0
    %191 = vmatpush.msra.mxu0 0.0
    %192 = vmatpush.msra.mxu0 0.0
    %193 = vmatpush.msra.mxu0 0.0
    %194 = vmatpush.msra.mxu0 0.0
    %195 = vmatpush.msra.mxu0 0.0
    %196 = vmatpush.msra.mxu0 0.0
    %197 = vmatpush.msra.mxu0 0.0
    %198 = vmatpush.msra.mxu0 0.0
    %199 = vmatpush.msra.mxu0 0.0
    %200 = vmatpush.msra.mxu0 %v140
    %201 = vmatpush.msra.mxu0 %v139
    %202 = vmatpush.msra.mxu0 %v138
    %203 = vmatpush.msra.mxu0 %v137
    %204 = vmatmul.f32.gmra.mxu0 %v183
    %v205 = vpop.f32.mrf.mxu0
    %v206 = vadd.f32 0.0, %v205
    %207 = vmatmul.f32.gmra.mxu0 %v186
    %v208 = vpop.f32.mrf.mxu0
    %v209 = vadd.f32 0.0, %v208
    %210 = vdwg.mxu0
    %s211 = scalar_lea.vmem [#allocation7], 48
    %v212 = vld [vmem:[%s211] sm:$0xff]
    %v213 = vld [vmem:[%s211 + $0x8] sm:$0xff]
    %v214 = vld [vmem:[%s211 + $0x10] sm:$0xff]
    %v215 = vld [vmem:[%s211 + $0x18] sm:$0xff]
    %v216 = vld [vmem:[%s211 + $0x20] sm:$0xff]
    %v217 = vld [vmem:[%s211 + $0x28] sm:$0xff]
    %vm218 = vcmask 392192
    %v220 = vsel %vm218, %v206, 0
    %v223 = vsel %vm218, %v209, 0
    %225 = vmatpush.msra.mxu0 0.0
    %226 = vmatpush.msra.mxu0 0.0
    %227 = vmatpush.msra.mxu0 0.0
    %228 = vmatpush.msra.mxu0 0.0
    %229 = vmatpush.msra.mxu0 0.0
    %230 = vmatpush.msra.mxu0 0.0
    %231 = vmatpush.msra.mxu0 0.0
    %232 = vmatpush.msra.mxu0 0.0
    %233 = vmatpush.msra.mxu0 0.0
    %234 = vmatpush.msra.mxu0 0.0
    %235 = vmatpush.msra.mxu0 %v217
    %236 = vmatpush.msra.mxu0 %v216
    %237 = vmatpush.msra.mxu0 %v215
    %238 = vmatpush.msra.mxu0 %v214
    %239 = vmatpush.msra.mxu0 %v213
    %240 = vmatpush.msra.mxu0 %v212
    %241 = vmatmul.f32.gmra.mxu0 %v220
    %v242 = vpop.f32.mrf.mxu0
    %v243 = vadd.f32 0.0, %v242
    %244 = vmatmul.f32.gmra.mxu0 %v223
    %v245 = vpop.f32.mrf.mxu0
    %v246 = vadd.f32 0.0, %v245
    %247 = vdwg.mxu0
    %v249 = vsel %vm218, %v168, 0
    %v252 = vsel %vm218, %v171, 0
    %254 = vmatpush.msra.mxu0 0.0
    %255 = vmatpush.msra.mxu0 0.0
    %256 = vmatpush.msra.mxu0 0.0
    %257 = vmatpush.msra.mxu0 0.0
    %258 = vmatpush.msra.mxu0 0.0
    %259 = vmatpush.msra.mxu0 0.0
    %260 = vmatpush.msra.mxu0 0.0
    %261 = vmatpush.msra.mxu0 0.0
    %262 = vmatpush.msra.mxu0 0.0
    %263 = vmatpush.msra.mxu0 0.0
    %264 = vmatpush.msra.mxu0 %v178
    %265 = vmatpush.msra.mxu0 %v177
    %266 = vmatpush.msra.mxu0 %v176
    %267 = vmatpush.msra.mxu0 %v175
    %268 = vmatpush.msra.mxu0 %v174
    %269 = vmatpush.msra.mxu0 %v173
    %270 = vmatmul.f32.gmra.mxu0 %v249
    %v271 = vpop.f32.mrf.mxu0
    %v272 = vadd.f32 %v243, %v271
    %273 = vmatmul.f32.gmra.mxu0 %v252
    %v274 = vpop.f32.mrf.mxu0
    %v275 = vadd.f32 %v246, %v274
    %276 = vdwg.mxu0
    %s277 = scalar_lea.vmem [#allocation5], 32
    %v278 = vld [vmem:[%s277] sm:$0xff]
    %v279 = vld [vmem:[%s277 + $0x8] sm:$0xff]
    %v281 = vsel %vm143, %v278, 0
    %v284 = vsel %vm143, %v279, 0
    %286 = vmatpush.msra.mxu0 0.0
    %287 = vmatpush.msra.mxu0 0.0
    %288 = vmatpush.msra.mxu0 0.0
    %289 = vmatpush.msra.mxu0 0.0
    %290 = vmatpush.msra.mxu0 0.0
    %291 = vmatpush.msra.mxu0 0.0
    %292 = vmatpush.msra.mxu0 0.0
    %293 = vmatpush.msra.mxu0 0.0
    %294 = vmatpush.msra.mxu0 0.0
    %295 = vmatpush.msra.mxu0 0.0
    %296 = vmatpush.msra.mxu0 0.0
    %297 = vmatpush.msra.mxu0 0.0
    %298 = vmatpush.msra.mxu0 %v140
    %299 = vmatpush.msra.mxu0 %v139
    %300 = vmatpush.msra.mxu0 %v138
    %301 = vmatpush.msra.mxu0 %v137
    %302 = vmatmul.f32.gmra.mxu0 %v281
    %v303 = vpop.f32.mrf.mxu0
    %v304 = vadd.f32 0.0, %v303
    %305 = vmatmul.f32.gmra.mxu0 %v284
    %v306 = vpop.f32.mrf.mxu0
    %v307 = vadd.f32 0.0, %v306
    %308 = vdwg.mxu0
    %s309 = scalar_lea.vmem [#allocation7], 96
    %v310 = vld [vmem:[%s309] sm:$0xff]
    %v311 = vld [vmem:[%s309 + $0x8] sm:$0xff]
    %v312 = vld [vmem:[%s309 + $0x10] sm:$0xff]
    %v313 = vld [vmem:[%s309 + $0x18] sm:$0xff]
    %v314 = vld [vmem:[%s309 + $0x20] sm:$0xff]
    %v315 = vld [vmem:[%s309 + $0x28] sm:$0xff]
    %v317 = vsel %vm218, %v304, 0
    %v320 = vsel %vm218, %v307, 0
    %322 = vmatpush.msra.mxu0 0.0
    %323 = vmatpush.msra.mxu0 0.0
    %324 = vmatpush.msra.mxu0 0.0
    %325 = vmatpush.msra.mxu0 0.0
    %326 = vmatpush.msra.mxu0 0.0
    %327 = vmatpush.msra.mxu0 0.0
    %328 = vmatpush.msra.mxu0 0.0
    %329 = vmatpush.msra.mxu0 0.0
    %330 = vmatpush.msra.mxu0 0.0
    %331 = vmatpush.msra.mxu0 0.0
    %332 = vmatpush.msra.mxu0 %v315
    %333 = vmatpush.msra.mxu0 %v314
    %334 = vmatpush.msra.mxu0 %v313
    %335 = vmatpush.msra.mxu0 %v312
    %336 = vmatpush.msra.mxu0 %v311
    %337 = vmatpush.msra.mxu0 %v310
    %338 = vmatmul.f32.gmra.mxu0 %v317
    %v339 = vpop.f32.mrf.mxu0
    %v340 = vadd.f32 0.0, %v339
    %341 = vmatmul.f32.gmra.mxu0 %v320
    %v342 = vpop.f32.mrf.mxu0
    %v343 = vadd.f32 0.0, %v342
    %344 = vdwg.mxu0
    %v345 = vadd.f32 %v272, %v340
    %v346 = vadd.f32 %v275, %v343
    %s347 = scalar_lea.vmem [#allocation5], 48
    %v348 = vld [vmem:[%s347] sm:$0xff]
    %v349 = vld [vmem:[%s347 + $0x8] sm:$0xff]
    %v351 = vsel %vm143, %v348, 0
    %v354 = vsel %vm143, %v349, 0
    %356 = vmatpush.msra.mxu0 0.0
    %357 = vmatpush.msra.mxu0 0.0
    %358 = vmatpush.msra.mxu0 0.0
    %359 = vmatpush.msra.mxu0 0.0
    %360 = vmatpush.msra.mxu0 0.0
    %361 = vmatpush.msra.mxu0 0.0
    %362 = vmatpush.msra.mxu0 0.0
    %363 = vmatpush.msra.mxu0 0.0
    %364 = vmatpush.msra.mxu0 0.0
    %365 = vmatpush.msra.mxu0 0.0
    %366 = vmatpush.msra.mxu0 0.0
    %367 = vmatpush.msra.mxu0 0.0
    %368 = vmatpush.msra.mxu0 %v140
    %369 = vmatpush.msra.mxu0 %v139
    %370 = vmatpush.msra.mxu0 %v138
    %371 = vmatpush.msra.mxu0 %v137
    %372 = vmatmul.f32.gmra.mxu0 %v351
    %v373 = vpop.f32.mrf.mxu0
    %v374 = vadd.f32 0.0, %v373
    %375 = vmatmul.f32.gmra.mxu0 %v354
    %v376 = vpop.f32.mrf.mxu0
    %v377 = vadd.f32 0.0, %v376
    %378 = vdwg.mxu0
    %s379 = scalar_lea.vmem [#allocation7], 144
    %v380 = vld [vmem:[%s379] sm:$0xff]
    %v381 = vld [vmem:[%s379 + $0x8] sm:$0xff]
    %v382 = vld [vmem:[%s379 + $0x10] sm:$0xff]
    %v383 = vld [vmem:[%s379 + $0x18] sm:$0xff]
    %v384 = vld [vmem:[%s379 + $0x20] sm:$0xff]
    %v385 = vld [vmem:[%s379 + $0x28] sm:$0xff]
    %v387 = vsel %vm218, %v374, 0
    %v390 = vsel %vm218, %v377, 0
    %392 = vmatpush.msra.mxu0 0.0
    %393 = vmatpush.msra.mxu0 0.0
    %394 = vmatpush.msra.mxu0 0.0
    %395 = vmatpush.msra.mxu0 0.0
    %396 = vmatpush.msra.mxu0 0.0
    %397 = vmatpush.msra.mxu0 0.0
    %398 = vmatpush.msra.mxu0 0.0
    %399 = vmatpush.msra.mxu0 0.0
    %400 = vmatpush.msra.mxu0 0.0
    %401 = vmatpush.msra.mxu0 0.0
    %402 = vmatpush.msra.mxu0 %v385
    %403 = vmatpush.msra.mxu0 %v384
    %404 = vmatpush.msra.mxu0 %v383
    %405 = vmatpush.msra.mxu0 %v382
    %406 = vmatpush.msra.mxu0 %v381
    %407 = vmatpush.msra.mxu0 %v380
    %408 = vmatmul.f32.gmra.mxu0 %v387
    %v409 = vpop.f32.mrf.mxu0
    %v410 = vadd.f32 0.0, %v409
    %411 = vmatmul.f32.gmra.mxu0 %v390
    %v412 = vpop.f32.mrf.mxu0
    %v413 = vadd.f32 0.0, %v412
    %414 = vdwg.mxu0
    %v415 = vadd.f32 %v345, %v410
    %v416 = vadd.f32 %v346, %v413
    %v417 = vld [vmem:[%s3] sm:$0x1]
    %v419 = vperm.slane %v417, 0
    %v421 = vadd.f32 %v415, %v419
    %v422 = vadd.f32 %v416, %v419
    %vm423 = vcmp.ge.f32.partialorder %v421, 0.0
    %vm424 = vcmp.ge.f32.partialorder %v422, 0.0
    %v425 = vmul.f32 %v421, 0.2
    %v426 = vmul.f32 %v422, 0.2
    %v427 = vsel %vm423, %v421, %v425
    %v428 = vsel %vm424, %v422, %v426
    %v429 = vld [vmem:[#allocation8] sm:$0xff]
    %vm430 = vcmask 130048
    %v432 = vsel %vm430, %v429, 0
    %434 = vmatpush.msra.mxu0 0.0
    %435 = vmatpush.msra.mxu0 0.0
    %436 = vmatpush.msra.mxu0 0.0
    %437 = vmatpush.msra.mxu0 0.0
    %438 = vmatpush.msra.mxu0 0.0
    %439 = vmatpush.msra.mxu0 0.0
    %440 = vmatpush.msra.mxu0 0.0
    %441 = vmatpush.msra.mxu0 0.0
    %442 = vmatpush.msra.mxu0 0.0
    %443 = vmatpush.msra.mxu0 0.0
    %444 = vmatpush.msra.mxu0 0.0
    %445 = vmatpush.msra.mxu0 0.0
    %446 = vmatpush.msra.mxu0 0.0
    %447 = vmatpush.msra.mxu0 0.0
    %448 = vmatpush.msra.mxu0 %v428
    %449 = vmatpush.msra.mxu0 %v427
    %450 = vmatmul.f32.gmra.mxu0 %v432
    %v451 = vpop.f32.mrf.mxu0
    %v452 = vadd.f32 0.0, %v451
    %453 = vdwg.mxu0
    %v454 = vld [vmem:[%s5] sm:$0xff]
    %v455 = vld [vmem:[%s5 + $0x8] sm:$0xff]
    %v456 = vld [vmem:[%s5 + $0x10] sm:$0xff]
    %v457 = vld [vmem:[%s5 + $0x18] sm:$0xff]
    %v458 = vld [vmem:[%s5 + $0x20] sm:$0xff]
    %v459 = vld [vmem:[%s5 + $0x28] sm:$0xff]
    %v460 = vld [vmem:[%s5 + $0x30] sm:$0xff]
    %v461 = vld [vmem:[%s5 + $0x38] sm:$0xff]
    %v462 = vld [vmem:[%s5 + $0x40] sm:$0xff]
    %v463 = vld [vmem:[%s5 + $0x48] sm:$0xff]
    %v464 = vld [vmem:[%s5 + $0x50] sm:$0xff]
    %v465 = vld [vmem:[%s5 + $0x58] sm:$0xff]
    %v466 = vld [vmem:[%s5 + $0x60] sm:$0xff]
    %v467 = vld [vmem:[%s5 + $0x68] sm:$0xff]
    %v468 = vld [vmem:[%s5 + $0x70] sm:$0xff]
    %v469 = vld [vmem:[%s5 + $0x78] sm:$0xff]
    %s470 = scalar_lea.vmem [#allocation8], 8
    %v471 = vld [vmem:[%s470] sm:$0xff]
    %v473 = vsel %vm430, %v471, 0
    %475 = vmatpush.msra.mxu0 0.0
    %476 = vmatpush.msra.mxu0 0.0
    %477 = vmatpush.msra.mxu0 0.0
    %478 = vmatpush.msra.mxu0 0.0
    %479 = vmatpush.msra.mxu0 0.0
    %480 = vmatpush.msra.mxu0 0.0
    %481 = vmatpush.msra.mxu0 0.0
    %482 = vmatpush.msra.mxu0 0.0
    %483 = vmatpush.msra.mxu0 0.0
    %484 = vmatpush.msra.mxu0 0.0
    %485 = vmatpush.msra.mxu0 0.0
    %486 = vmatpush.msra.mxu0 0.0
    %487 = vmatpush.msra.mxu0 0.0
    %488 = vmatpush.msra.mxu0 0.0
    %489 = vmatpush.msra.mxu0 %v428
    %490 = vmatpush.msra.mxu0 %v427
    %491 = vmatmul.f32.gmra.mxu0 %v473
    %v492 = vpop.f32.mrf.mxu0
    %v493 = vadd.f32 0.0, %v492
    %494 = vdwg.mxu0
    %s495 = scalar_lea.vmem %s5, 128
    %v496 = vld [vmem:[%s495] sm:$0xff]
    %v497 = vld [vmem:[%s495 + $0x8] sm:$0xff]
    %v498 = vld [vmem:[%s495 + $0x10] sm:$0xff]
    %v499 = vld [vmem:[%s495 + $0x18] sm:$0xff]
    %v500 = vld [vmem:[%s495 + $0x20] sm:$0xff]
    %v501 = vld [vmem:[%s495 + $0x28] sm:$0xff]
    %v502 = vld [vmem:[%s495 + $0x30] sm:$0xff]
    %v503 = vld [vmem:[%s495 + $0x38] sm:$0xff]
    %v504 = vld [vmem:[%s495 + $0x40] sm:$0xff]
    %v505 = vld [vmem:[%s495 + $0x48] sm:$0xff]
    %v506 = vld [vmem:[%s495 + $0x50] sm:$0xff]
    %v507 = vld [vmem:[%s495 + $0x58] sm:$0xff]
    %v508 = vld [vmem:[%s495 + $0x60] sm:$0xff]
    %v509 = vld [vmem:[%s495 + $0x68] sm:$0xff]
    %v510 = vld [vmem:[%s495 + $0x70] sm:$0xff]
    %v511 = vld [vmem:[%s495 + $0x78] sm:$0xff]
    %512 = vmatpush.msra.mxu0 %v511
    %513 = vmatpush.msra.mxu0 %v510
    %514 = vmatpush.msra.mxu0 %v509
    %515 = vmatpush.msra.mxu0 %v508
    %516 = vmatpush.msra.mxu0 %v507
    %517 = vmatpush.msra.mxu0 %v506
    %518 = vmatpush.msra.mxu0 %v505
    %519 = vmatpush.msra.mxu0 %v504
    %520 = vmatpush.msra.mxu0 %v503
    %521 = vmatpush.msra.mxu0 %v502
    %522 = vmatpush.msra.mxu0 %v501
    %523 = vmatpush.msra.mxu0 %v500
    %524 = vmatpush.msra.mxu0 %v499
    %525 = vmatpush.msra.mxu0 %v498
    %526 = vmatpush.msra.mxu0 %v497
    %527 = vmatpush.msra.mxu0 %v496
    %528 = vmatmul.f32.gmra.mxu0 %v493
    %v529 = vpop.f32.mrf.mxu0
    %v530 = vadd.f32 0.0, %v529
    %531 = vdwg.mxu0
    %532 = vmatpush.msra.mxu0 %v469
    %533 = vmatpush.msra.mxu0 %v468
    %534 = vmatpush.msra.mxu0 %v467
    %535 = vmatpush.msra.mxu0 %v466
    %536 = vmatpush.msra.mxu0 %v465
    %537 = vmatpush.msra.mxu0 %v464
    %538 = vmatpush.msra.mxu0 %v463
    %539 = vmatpush.msra.mxu0 %v462
    %540 = vmatpush.msra.mxu0 %v461
    %541 = vmatpush.msra.mxu0 %v460
    %542 = vmatpush.msra.mxu0 %v459
    %543 = vmatpush.msra.mxu0 %v458
    %544 = vmatpush.msra.mxu0 %v457
    %545 = vmatpush.msra.mxu0 %v456
    %546 = vmatpush.msra.mxu0 %v455
    %547 = vmatpush.msra.mxu0 %v454
    %548 = vmatmul.f32.gmra.mxu0 %v452
    %v549 = vpop.f32.mrf.mxu0
    %v550 = vadd.f32 %v530, %v549
    %551 = vdwg.mxu0
    %s552 = scalar_lea.vmem [#allocation8], 16
    %v553 = vld [vmem:[%s552] sm:$0xff]
    %v555 = vsel %vm430, %v553, 0
    %557 = vmatpush.msra.mxu0 0.0
    %558 = vmatpush.msra.mxu0 0.0
    %559 = vmatpush.msra.mxu0 0.0
    %560 = vmatpush.msra.mxu0 0.0
    %561 = vmatpush.msra.mxu0 0.0
    %562 = vmatpush.msra.mxu0 0.0
    %563 = vmatpush.msra.mxu0 0.0
    %564 = vmatpush.msra.mxu0 0.0
    %565 = vmatpush.msra.mxu0 0.0
    %566 = vmatpush.msra.mxu0 0.0
    %567 = vmatpush.msra.mxu0 0.0
    %568 = vmatpush.msra.mxu0 0.0
    %569 = vmatpush.msra.mxu0 0.0
    %570 = vmatpush.msra.mxu0 0.0
    %571 = vmatpush.msra.mxu0 %v428
    %572 = vmatpush.msra.mxu0 %v427
    %573 = vmatmul.f32.gmra.mxu0 %v555
    %v574 = vpop.f32.mrf.mxu0
    %v575 = vadd.f32 0.0, %v574
    %576 = vdwg.mxu0
    %s577 = scalar_lea.vmem %s5, 256
    %v578 = vld [vmem:[%s577] sm:$0xff]
    %v579 = vld [vmem:[%s577 + $0x8] sm:$0xff]
    %v580 = vld [vmem:[%s577 + $0x10] sm:$0xff]
    %v581 = vld [vmem:[%s577 + $0x18] sm:$0xff]
    %v582 = vld [vmem:[%s577 + $0x20] sm:$0xff]
    %v583 = vld [vmem:[%s577 + $0x28] sm:$0xff]
    %v584 = vld [vmem:[%s577 + $0x30] sm:$0xff]
    %v585 = vld [vmem:[%s577 + $0x38] sm:$0xff]
    %v586 = vld [vmem:[%s577 + $0x40] sm:$0xff]
    %v587 = vld [vmem:[%s577 + $0x48] sm:$0xff]
    %v588 = vld [vmem:[%s577 + $0x50] sm:$0xff]
    %v589 = vld [vmem:[%s577 + $0x58] sm:$0xff]
    %v590 = vld [vmem:[%s577 + $0x60] sm:$0xff]
    %v591 = vld [vmem:[%s577 + $0x68] sm:$0xff]
    %v592 = vld [vmem:[%s577 + $0x70] sm:$0xff]
    %v593 = vld [vmem:[%s577 + $0x78] sm:$0xff]
    %594 = vmatpush.msra.mxu0 %v593
    %595 = vmatpush.msra.mxu0 %v592
    %596 = vmatpush.msra.mxu0 %v591
    %597 = vmatpush.msra.mxu0 %v590
    %598 = vmatpush.msra.mxu0 %v589
    %599 = vmatpush.msra.mxu0 %v588
    %600 = vmatpush.msra.mxu0 %v587
    %601 = vmatpush.msra.mxu0 %v586
    %602 = vmatpush.msra.mxu0 %v585
    %603 = vmatpush.msra.mxu0 %v584
    %604 = vmatpush.msra.mxu0 %v583
    %605 = vmatpush.msra.mxu0 %v582
    %606 = vmatpush.msra.mxu0 %v581
    %607 = vmatpush.msra.mxu0 %v580
    %608 = vmatpush.msra.mxu0 %v579
    %609 = vmatpush.msra.mxu0 %v578
    %610 = vmatmul.f32.gmra.mxu0 %v575
    %v611 = vpop.f32.mrf.mxu0
    %v612 = vadd.f32 0.0, %v611
    %613 = vdwg.mxu0
    %v614 = vadd.f32 %v550, %v612
    %s615 = scalar_lea.vmem [#allocation8], 24
    %v616 = vld [vmem:[%s615] sm:$0xff]
    %v618 = vsel %vm430, %v616, 0
    %620 = vmatpush.msra.mxu0 0.0
    %621 = vmatpush.msra.mxu0 0.0
    %622 = vmatpush.msra.mxu0 0.0
    %623 = vmatpush.msra.mxu0 0.0
    %624 = vmatpush.msra.mxu0 0.0
    %625 = vmatpush.msra.mxu0 0.0
    %626 = vmatpush.msra.mxu0 0.0
    %627 = vmatpush.msra.mxu0 0.0
    %628 = vmatpush.msra.mxu0 0.0
    %629 = vmatpush.msra.mxu0 0.0
    %630 = vmatpush.msra.mxu0 0.0
    %631 = vmatpush.msra.mxu0 0.0
    %632 = vmatpush.msra.mxu0 0.0
    %633 = vmatpush.msra.mxu0 0.0
    %634 = vmatpush.msra.mxu0 %v428
    %635 = vmatpush.msra.mxu0 %v427
    %636 = vmatmul.f32.gmra.mxu0 %v618
    %v637 = vpop.f32.mrf.mxu0
    %v638 = vadd.f32 0.0, %v637
    %639 = vdwg.mxu0
    %s640 = scalar_lea.vmem %s5, 384
    %v641 = vld [vmem:[%s640] sm:$0xff]
    %v642 = vld [vmem:[%s640 + $0x8] sm:$0xff]
    %v643 = vld [vmem:[%s640 + $0x10] sm:$0xff]
    %v644 = vld [vmem:[%s640 + $0x18] sm:$0xff]
    %v645 = vld [vmem:[%s640 + $0x20] sm:$0xff]
    %v646 = vld [vmem:[%s640 + $0x28] sm:$0xff]
    %v647 = vld [vmem:[%s640 + $0x30] sm:$0xff]
    %v648 = vld [vmem:[%s640 + $0x38] sm:$0xff]
    %v649 = vld [vmem:[%s640 + $0x40] sm:$0xff]
    %v650 = vld [vmem:[%s640 + $0x48] sm:$0xff]
    %v651 = vld [vmem:[%s640 + $0x50] sm:$0xff]
    %v652 = vld [vmem:[%s640 + $0x58] sm:$0xff]
    %v653 = vld [vmem:[%s640 + $0x60] sm:$0xff]
    %v654 = vld [vmem:[%s640 + $0x68] sm:$0xff]
    %v655 = vld [vmem:[%s640 + $0x70] sm:$0xff]
    %v656 = vld [vmem:[%s640 + $0x78] sm:$0xff]
    %657 = vmatpush.msra.mxu0 %v656
    %658 = vmatpush.msra.mxu0 %v655
    %659 = vmatpush.msra.mxu0 %v654
    %660 = vmatpush.msra.mxu0 %v653
    %661 = vmatpush.msra.mxu0 %v652
    %662 = vmatpush.msra.mxu0 %v651
    %663 = vmatpush.msra.mxu0 %v650
    %664 = vmatpush.msra.mxu0 %v649
    %665 = vmatpush.msra.mxu0 %v648
    %666 = vmatpush.msra.mxu0 %v647
    %667 = vmatpush.msra.mxu0 %v646
    %668 = vmatpush.msra.mxu0 %v645
    %669 = vmatpush.msra.mxu0 %v644
    %670 = vmatpush.msra.mxu0 %v643
    %671 = vmatpush.msra.mxu0 %v642
    %672 = vmatpush.msra.mxu0 %v641
    %673 = vmatmul.f32.gmra.mxu0 %v638
    %v674 = vpop.f32.mrf.mxu0
    %v675 = vadd.f32 0.0, %v674
    %676 = vdwg.mxu0
    %v677 = vadd.f32 %v614, %v675
    %v678 = vld [vmem:[#allocation10] sm:$0xff]
    %v679 = vld [vmem:[#allocation10 + $0x8] sm:$0xff]
    %v680 = vld [vmem:[#allocation10 + $0x10] sm:$0xff]
    %v681 = vld [vmem:[#allocation10 + $0x18] sm:$0xff]
    %v682 = vld [vmem:[#allocation10 + $0x20] sm:$0xff]
    %v683 = vld [vmem:[#allocation10 + $0x28] sm:$0xff]
    %v684 = vld [vmem:[#allocation10 + $0x30] sm:$0xff]
    %v685 = vld [vmem:[#allocation10 + $0x38] sm:$0xff]
    %v686 = vld [vmem:[#allocation10 + $0x40] sm:$0xff]
    %v687 = vld [vmem:[#allocation10 + $0x48] sm:$0xff]
    %v688 = vld [vmem:[#allocation10 + $0x50] sm:$0xff]
    %v689 = vld [vmem:[#allocation10 + $0x58] sm:$0xff]
    %v690 = vld [vmem:[#allocation10 + $0x60] sm:$0xff]
    %v691 = vld [vmem:[#allocation10 + $0x68] sm:$0xff]
    %v692 = vld [vmem:[#allocation10 + $0x70] sm:$0xff]
    %v693 = vld [vmem:[#allocation10 + $0x78] sm:$0xff]
    %v694 = vrot.slane %v677, 4
    %v695 = vadd.f32 %v677, %v694
    %v696 = vrot.slane %v695, 2
    %v697 = vadd.f32 %v695, %v696
    %v698 = vrot.slane %v697, 1
    %v699 = vadd.f32 %v697, %v698
    %700 = vmatpush.msra.mxu0 %v693
    %701 = vmatpush.msra.mxu0 %v692
    %702 = vmatpush.msra.mxu0 %v691
    %703 = vmatpush.msra.mxu0 %v690
    %704 = vmatpush.msra.mxu0 %v689
    %705 = vmatpush.msra.mxu0 %v688
    %706 = vmatpush.msra.mxu0 %v687
    %707 = vmatpush.msra.mxu0 %v686
    %708 = vmatpush.msra.mxu0 %v685
    %709 = vmatpush.msra.mxu0 %v684
    %710 = vmatpush.msra.mxu0 %v683
    %711 = vmatpush.msra.mxu0 %v682
    %712 = vmatpush.msra.mxu0 %v681
    %713 = vmatpush.msra.mxu0 %v680
    %714 = vmatpush.msra.mxu0 %v679
    %715 = vmatpush.msra.mxu0 %v678
    %716 = vmatmul.f32.gmra.mxu0 %v699
    %v717 = vpop.f32.mrf.mxu0
    %v718 = vadd.f32 0.0, %v717
    %719 = vdwg.mxu0
    %v720 = vperm.slane %v718, 0
    %v721 = vsub.f32 %v677, %v720
    %v722 = vmul.f32 %v721, %v721
    %v723 = vrot.slane %v722, 4
    %v724 = vadd.f32 %v722, %v723
    %v725 = vrot.slane %v724, 2
    %v726 = vadd.f32 %v724, %v725
    %v727 = vrot.slane %v726, 1
    %v728 = vadd.f32 %v726, %v727
    %729 = vmatpush.msra.mxu0 %v693
    %730 = vmatpush.msra.mxu0 %v692
    %731 = vmatpush.msra.mxu0 %v691
    %732 = vmatpush.msra.mxu0 %v690
    %733 = vmatpush.msra.mxu0 %v689
    %734 = vmatpush.msra.mxu0 %v688
    %735 = vmatpush.msra.mxu0 %v687
    %736 = vmatpush.msra.mxu0 %v686
    %737 = vmatpush.msra.mxu0 %v685
    %738 = vmatpush.msra.mxu0 %v684
    %739 = vmatpush.msra.mxu0 %v683
    %740 = vmatpush.msra.mxu0 %v682
    %741 = vmatpush.msra.mxu0 %v681
    %742 = vmatpush.msra.mxu0 %v680
    %743 = vmatpush.msra.mxu0 %v679
    %744 = vmatpush.msra.mxu0 %v678
    %745 = vmatmul.f32.gmra.mxu0 %v728
    %v746 = vpop.f32.mrf.mxu0
    %v747 = vadd.f32 1e-05, %v746
    %748 = vdwg.mxu0
    %v749 = vrsqrt.pop %v747
    %v750 = vmul.f32 %v749, %v747
    %v751 = vmul.f32 %v750, %v749
    %v752 = vmul.f32 0.5, %v751
    %v753 = vsub.f32 1.5, %v752
    %v754 = vmul.f32 %v749, %v753
    %vm755 = vweird.f32 %v747
    %vm756 = vweird.f32 %v749
    %vm757 = vmor %vm755, %vm756
    %v758 = vsel %vm757, %v749, %v754
    %v759 = vld [vmem:[%s7] sm:$0x1]
    %v760 = vmul.f32 %v758, %v759
    %v761 = vperm.slane %v760, 0
    %v762 = vmul.f32 %v721, %v761
    %v763 = vld [vmem:[%s8] sm:$0x1]
    %v765 = vperm.slane %v763, 0
    %v767 = vadd.f32 %v762, %v765
    %vm768 = vcmp.ge.f32.partialorder %v767, 0.0
    %v769 = vmul.f32 %v767, 0.2
    %v770 = vsel %vm768, %v767, %v769
    %v771 = vld [vmem:[#allocation11] sm:$0x3]
    %vm772 = vcmask 64512
    %v774 = vsel %vm772, %v771, 0
    %776 = vmatpush.msra.mxu0 0.0
    %777 = vmatpush.msra.mxu0 0.0
    %778 = vmatpush.msra.mxu0 0.0
    %779 = vmatpush.msra.mxu0 0.0
    %780 = vmatpush.msra.mxu0 0.0
    %781 = vmatpush.msra.mxu0 0.0
    %782 = vmatpush.msra.mxu0 0.0
    %783 = vmatpush.msra.mxu0 0.0
    %784 = vmatpush.msra.mxu0 0.0
    %785 = vmatpush.msra.mxu0 0.0
    %786 = vmatpush.msra.mxu0 0.0
    %787 = vmatpush.msra.mxu0 0.0
    %788 = vmatpush.msra.mxu0 0.0
    %789 = vmatpush.msra.mxu0 0.0
    %790 = vmatpush.msra.mxu0 0.0
    %791 = vmatpush.msra.mxu0 %v770
    %792 = vmatmul.f32.gmra.mxu0 %v774
    %v793 = vpop.f32.mrf.mxu0
    %v794 = vadd.f32 0.0, %v793
    %795 = vdwg.mxu0
    %v796 = vld [vmem:[%s10] sm:$0xff]
    %v797 = vld [vmem:[%s10 + $0x8] sm:$0xff]
    %v798 = vld [vmem:[%s10 + $0x10] sm:$0xff]
    %v799 = vld [vmem:[%s10 + $0x18] sm:$0xff]
    %v800 = vld [vmem:[%s10 + $0x20] sm:$0xff]
    %v801 = vld [vmem:[%s10 + $0x28] sm:$0xff]
    %v802 = vld [vmem:[%s10 + $0x30] sm:$0xff]
    %v803 = vld [vmem:[%s10 + $0x38] sm:$0xff]
    %v804 = vld [vmem:[%s10 + $0x40] sm:$0xff]
    %v805 = vld [vmem:[%s10 + $0x48] sm:$0xff]
    %v806 = vld [vmem:[%s10 + $0x50] sm:$0xff]
    %v807 = vld [vmem:[%s10 + $0x58] sm:$0xff]
    %v808 = vld [vmem:[%s10 + $0x60] sm:$0xff]
    %v809 = vld [vmem:[%s10 + $0x68] sm:$0xff]
    %v810 = vld [vmem:[%s10 + $0x70] sm:$0xff]
    %v811 = vld [vmem:[%s10 + $0x78] sm:$0xff]
    %s812 = scalar_lea.vmem [#allocation11], 2
    %v813 = vld [vmem:[%s812] sm:$0x3]
    %v815 = vsel %vm772, %v813, 0
    %817 = vmatpush.msra.mxu0 0.0
    %818 = vmatpush.msra.mxu0 0.0
    %819 = vmatpush.msra.mxu0 0.0
    %820 = vmatpush.msra.mxu0 0.0
    %821 = vmatpush.msra.mxu0 0.0
    %822 = vmatpush.msra.mxu0 0.0
    %823 = vmatpush.msra.mxu0 0.0
    %824 = vmatpush.msra.mxu0 0.0
    %825 = vmatpush.msra.mxu0 0.0
    %826 = vmatpush.msra.mxu0 0.0
    %827 = vmatpush.msra.mxu0 0.0
    %828 = vmatpush.msra.mxu0 0.0
    %829 = vmatpush.msra.mxu0 0.0
    %830 = vmatpush.msra.mxu0 0.0
    %831 = vmatpush.msra.mxu0 0.0
    %832 = vmatpush.msra.mxu0 %v770
    %833 = vmatmul.f32.gmra.mxu0 %v815
    %v834 = vpop.f32.mrf.mxu0
    %v835 = vadd.f32 0.0, %v834
    %836 = vdwg.mxu0
    %s837 = scalar_lea.vmem %s10, 128
    %v838 = vld [vmem:[%s837] sm:$0xff]
    %v839 = vld [vmem:[%s837 + $0x8] sm:$0xff]
    %v840 = vld [vmem:[%s837 + $0x10] sm:$0xff]
    %v841 = vld [vmem:[%s837 + $0x18] sm:$0xff]
    %v842 = vld [vmem:[%s837 + $0x20] sm:$0xff]
    %v843 = vld [vmem:[%s837 + $0x28] sm:$0xff]
    %v844 = vld [vmem:[%s837 + $0x30] sm:$0xff]
    %v845 = vld [vmem:[%s837 + $0x38] sm:$0xff]
    %v846 = vld [vmem:[%s837 + $0x40] sm:$0xff]
    %v847 = vld [vmem:[%s837 + $0x48] sm:$0xff]
    %v848 = vld [vmem:[%s837 + $0x50] sm:$0xff]
    %v849 = vld [vmem:[%s837 + $0x58] sm:$0xff]
    %v850 = vld [vmem:[%s837 + $0x60] sm:$0xff]
    %v851 = vld [vmem:[%s837 + $0x68] sm:$0xff]
    %v852 = vld [vmem:[%s837 + $0x70] sm:$0xff]
    %v853 = vld [vmem:[%s837 + $0x78] sm:$0xff]
    %854 = vmatpush.msra.mxu0 %v853
    %855 = vmatpush.msra.mxu0 %v852
    %856 = vmatpush.msra.mxu0 %v851
    %857 = vmatpush.msra.mxu0 %v850
    %858 = vmatpush.msra.mxu0 %v849
    %859 = vmatpush.msra.mxu0 %v848
    %860 = vmatpush.msra.mxu0 %v847
    %861 = vmatpush.msra.mxu0 %v846
    %862 = vmatpush.msra.mxu0 %v845
    %863 = vmatpush.msra.mxu0 %v844
    %864 = vmatpush.msra.mxu0 %v843
    %865 = vmatpush.msra.mxu0 %v842
    %866 = vmatpush.msra.mxu0 %v841
    %867 = vmatpush.msra.mxu0 %v840
    %868 = vmatpush.msra.mxu0 %v839
    %869 = vmatpush.msra.mxu0 %v838
    %870 = vmatmul.f32.gmra.mxu0 %v835
    %v871 = vpop.f32.mrf.mxu0
    %v872 = vadd.f32 0.0, %v871
    %873 = vdwg.mxu0
    %874 = vmatpush.msra.mxu0 %v811
    %875 = vmatpush.msra.mxu0 %v810
    %876 = vmatpush.msra.mxu0 %v809
    %877 = vmatpush.msra.mxu0 %v808
    %878 = vmatpush.msra.mxu0 %v807
    %879 = vmatpush.msra.mxu0 %v806
    %880 = vmatpush.msra.mxu0 %v805
    %881 = vmatpush.msra.mxu0 %v804
    %882 = vmatpush.msra.mxu0 %v803
    %883 = vmatpush.msra.mxu0 %v802
    %884 = vmatpush.msra.mxu0 %v801
    %885 = vmatpush.msra.mxu0 %v800
    %886 = vmatpush.msra.mxu0 %v799
    %887 = vmatpush.msra.mxu0 %v798
    %888 = vmatpush.msra.mxu0 %v797
    %889 = vmatpush.msra.mxu0 %v796
    %890 = vmatmul.f32.gmra.mxu0 %v794
    %v891 = vpop.f32.mrf.mxu0
    %v892 = vadd.f32 %v872, %v891
    %893 = vdwg.mxu0
    %s894 = scalar_lea.vmem [#allocation11], 4
    %v895 = vld [vmem:[%s894] sm:$0x3]
    %v897 = vsel %vm772, %v895, 0
    %899 = vmatpush.msra.mxu0 0.0
    %900 = vmatpush.msra.mxu0 0.0
    %901 = vmatpush.msra.mxu0 0.0
    %902 = vmatpush.msra.mxu0 0.0
    %903 = vmatpush.msra.mxu0 0.0
    %904 = vmatpush.msra.mxu0 0.0
    %905 = vmatpush.msra.mxu0 0.0
    %906 = vmatpush.msra.mxu0 0.0
    %907 = vmatpush.msra.mxu0 0.0
    %908 = vmatpush.msra.mxu0 0.0
    %909 = vmatpush.msra.mxu0 0.0
    %910 = vmatpush.msra.mxu0 0.0
    %911 = vmatpush.msra.mxu0 0.0
    %912 = vmatpush.msra.mxu0 0.0
    %913 = vmatpush.msra.mxu0 0.0
    %914 = vmatpush.msra.mxu0 %v770
    %915 = vmatmul.f32.gmra.mxu0 %v897
    %v916 = vpop.f32.mrf.mxu0
    %v917 = vadd.f32 0.0, %v916
    %918 = vdwg.mxu0
    %s919 = scalar_lea.vmem %s10, 256
    %v920 = vld [vmem:[%s919] sm:$0xff]
    %v921 = vld [vmem:[%s919 + $0x8] sm:$0xff]
    %v922 = vld [vmem:[%s919 + $0x10] sm:$0xff]
    %v923 = vld [vmem:[%s919 + $0x18] sm:$0xff]
    %v924 = vld [vmem:[%s919 + $0x20] sm:$0xff]
    %v925 = vld [vmem:[%s919 + $0x28] sm:$0xff]
    %v926 = vld [vmem:[%s919 + $0x30] sm:$0xff]
    %v927 = vld [vmem:[%s919 + $0x38] sm:$0xff]
    %v928 = vld [vmem:[%s919 + $0x40] sm:$0xff]
    %v929 = vld [vmem:[%s919 + $0x48] sm:$0xff]
    %v930 = vld [vmem:[%s919 + $0x50] sm:$0xff]
    %v931 = vld [vmem:[%s919 + $0x58] sm:$0xff]
    %v932 = vld [vmem:[%s919 + $0x60] sm:$0xff]
    %v933 = vld [vmem:[%s919 + $0x68] sm:$0xff]
    %v934 = vld [vmem:[%s919 + $0x70] sm:$0xff]
    %v935 = vld [vmem:[%s919 + $0x78] sm:$0xff]
    %936 = vmatpush.msra.mxu0 %v935
    %937 = vmatpush.msra.mxu0 %v934
    %938 = vmatpush.msra.mxu0 %v933
    %939 = vmatpush.msra.mxu0 %v932
    %940 = vmatpush.msra.mxu0 %v931
    %941 = vmatpush.msra.mxu0 %v930
    %942 = vmatpush.msra.mxu0 %v929
    %943 = vmatpush.msra.mxu0 %v928
    %944 = vmatpush.msra.mxu0 %v927
    %945 = vmatpush.msra.mxu0 %v926
    %946 = vmatpush.msra.mxu0 %v925
    %947 = vmatpush.msra.mxu0 %v924
    %948 = vmatpush.msra.mxu0 %v923
    %949 = vmatpush.msra.mxu0 %v922
    %950 = vmatpush.msra.mxu0 %v921
    %951 = vmatpush.msra.mxu0 %v920
    %952 = vmatmul.f32.gmra.mxu0 %v917
    %v953 = vpop.f32.mrf.mxu0
    %v954 = vadd.f32 0.0, %v953
    %955 = vdwg.mxu0
    %v956 = vadd.f32 %v892, %v954
    %s957 = scalar_lea.vmem [#allocation11], 6
    %v958 = vld [vmem:[%s957] sm:$0x3]
    %v960 = vsel %vm772, %v958, 0
    %962 = vmatpush.msra.mxu0 0.0
    %963 = vmatpush.msra.mxu0 0.0
    %964 = vmatpush.msra.mxu0 0.0
    %965 = vmatpush.msra.mxu0 0.0
    %966 = vmatpush.msra.mxu0 0.0
    %967 = vmatpush.msra.mxu0 0.0
    %968 = vmatpush.msra.mxu0 0.0
    %969 = vmatpush.msra.mxu0 0.0
    %970 = vmatpush.msra.mxu0 0.0
    %971 = vmatpush.msra.mxu0 0.0
    %972 = vmatpush.msra.mxu0 0.0
    %973 = vmatpush.msra.mxu0 0.0
    %974 = vmatpush.msra.mxu0 0.0
    %975 = vmatpush.msra.mxu0 0.0
    %976 = vmatpush.msra.mxu0 0.0
    %977 = vmatpush.msra.mxu0 %v770
    %978 = vmatmul.f32.gmra.mxu0 %v960
    %v979 = vpop.f32.mrf.mxu0
    %v980 = vadd.f32 0.0, %v979
    %981 = vdwg.mxu0
    %s982 = scalar_lea.vmem %s10, 384
    %v983 = vld [vmem:[%s982] sm:$0xff]
    %v984 = vld [vmem:[%s982 + $0x8] sm:$0xff]
    %v985 = vld [vmem:[%s982 + $0x10] sm:$0xff]
    %v986 = vld [vmem:[%s982 + $0x18] sm:$0xff]
    %v987 = vld [vmem:[%s982 + $0x20] sm:$0xff]
    %v988 = vld [vmem:[%s982 + $0x28] sm:$0xff]
    %v989 = vld [vmem:[%s982 + $0x30] sm:$0xff]
    %v990 = vld [vmem:[%s982 + $0x38] sm:$0xff]
    %v991 = vld [vmem:[%s982 + $0x40] sm:$0xff]
    %v992 = vld [vmem:[%s982 + $0x48] sm:$0xff]
    %v993 = vld [vmem:[%s982 + $0x50] sm:$0xff]
    %v994 = vld [vmem:[%s982 + $0x58] sm:$0xff]
    %v995 = vld [vmem:[%s982 + $0x60] sm:$0xff]
    %v996 = vld [vmem:[%s982 + $0x68] sm:$0xff]
    %v997 = vld [vmem:[%s982 + $0x70] sm:$0xff]
    %v998 = vld [vmem:[%s982 + $0x78] sm:$0xff]
    %999 = vmatpush.msra.mxu0 %v998
    %1000 = vmatpush.msra.mxu0 %v997
    %1001 = vmatpush.msra.mxu0 %v996
    %1002 = vmatpush.msra.mxu0 %v995
    %1003 = vmatpush.msra.mxu0 %v994
    %1004 = vmatpush.msra.mxu0 %v993
    %1005 = vmatpush.msra.mxu0 %v992
    %1006 = vmatpush.msra.mxu0 %v991
    %1007 = vmatpush.msra.mxu0 %v990
    %1008 = vmatpush.msra.mxu0 %v989
    %1009 = vmatpush.msra.mxu0 %v988
    %1010 = vmatpush.msra.mxu0 %v987
    %1011 = vmatpush.msra.mxu0 %v986
    %1012 = vmatpush.msra.mxu0 %v985
    %1013 = vmatpush.msra.mxu0 %v984
    %1014 = vmatpush.msra.mxu0 %v983
    %1015 = vmatmul.f32.gmra.mxu0 %v980
    %v1016 = vpop.f32.mrf.mxu0
    %v1017 = vadd.f32 0.0, %v1016
    %1018 = vdwg.mxu0
    %v1019 = vadd.f32 %v956, %v1017
    %v1020 = vld [vmem:[#allocation2] sm:$0x1]
    %v1022 = vperm.slane %v1020, 0
    %v1024 = vadd.f32 %v1019, %v1022
    %v1025 = vsub.f32 0.0, %v1024
    %v1026 = vmul.f32 %v1025, 1.442695
    %v1027 = vpow.pop %v1026
    %v1028 = vadd.f32 %v1027, 1.0
    %v1029 = vrcp.pop %v1028
    %v1030 = vmul.f32 %v1028, %v1029
    %v1031 = vsub.f32 1.0, %v1030
    %v1032 = vmul.f32 %v1029, %v1031
    %v1033 = vadd.f32 %v1029, %v1032
    %vm1034 = vweird.f32 %v1028
    %vm1035 = vweird.f32 %v1029
    %vm1036 = vmor %vm1034, %vm1035
    %v1037 = vsel %vm1036, %v1029, %v1033
    %v1038 = vand.u32 2147483647, %v1028
    %vm1039 = vcmp.eq.f32.partialorder %v1038, 8.507059e+37
    %v1040 = vand.u32 %v1028, 2147483648
    %v1041 = vor.u32 1.1754944e-38, %v1040
    %v1042 = vsel %vm1039, %v1041, %v1037
    %v1043 = vmul.f32 1.0, %v1042
    %vm1044 = vcmask 1024
    %1045 = vst.msk [vmem:[%s12] sm:$0x3] %vm1044, %v1043
    // Predicated region
    $region74: #{tpu_custom_call.1} parent=1 // pred_check
      _
    $region75: #{tpu_custom_call.1} parent=1 // pred_check_branch
      %1047 = sbr.rel (0) target = $region77
    $region76: #{tpu_custom_call.1} parent=1 // pred_region
      _
    $region77: #{tpu_custom_call.1} parent=1 // pred_fallthru
      _
    // Predicated region
    $region78: #{tpu_custom_call.1} parent=1 // pred_check
      _
    $region79: #{tpu_custom_call.1} parent=1 // pred_check_branch
      %1049 = sbr.rel (0) target = $region81
    $region80: #{tpu_custom_call.1} parent=1 // pred_region
      _
    $region81: #{tpu_custom_call.1} parent=1 // pred_fallthru
      _
    %1050 = vsyncpa [#allocation4], 1
    %1051 = vsyncpa [#allocation6], 1
    %1052 = vsyncpa [#allocation9], 1
    %1053 = vsyncpa [#allocation12], 1

</llo_original>
